<compile_context>
chip_gen: v5e
topology: v5e:2x2
jax: 0.10.0
libtpu: 0.0.40
codegen_flags: <defaults>
</compile_context>

<pallas_src>
import jax
import jax.numpy as jnp
from jax.experimental import pallas as pl
from jax.experimental.pallas import tpu as pltpu


def _round_up(x, m):
    return ((x + m - 1) // m) * m


def _speaker_decoder_kernel(xh_ref, c0_ref, ctx_ref, mask_ref,
                            wg_ref, bg_ref, win_ref, woutc_ref, wouth_ref,
                            wdec_ref, bdec_ref,
                            h1_ref, c1_ref, alpha_ref, logit_ref):
    H = c0_ref.shape[-1]
    cdt = wg_ref.dtype            # MXU operand dtype (bf16 fast path or f32)

    xh = xh_ref[...]              # (Bt, E+H)  [word_embed, h_0] pre-concatenated
    c0 = c0_ref[...]              # (Bt, H)    f32
    ctx = ctx_ref[...].astype(jnp.float32)   # (Bt, S, H)  elementwise math in f32
    mask = mask_ref[...]          # (Bt, S)    1.0 -> masked

    # ---- LSTMCell: one deep-K MXU matmul on the pre-stacked [W_ih; W_hh] ----
    gates = jnp.dot(xh, wg_ref[...], preferred_element_type=jnp.float32) + bg_ref[...]   # (Bt, 4H) f32
    i_g = jax.nn.sigmoid(gates[:, 0 * H:1 * H])
    f_g = jax.nn.sigmoid(gates[:, 1 * H:2 * H])
    g_g = jnp.tanh(gates[:, 2 * H:3 * H])
    o_g = jax.nn.sigmoid(gates[:, 3 * H:4 * H])
    c1 = f_g * c0 + i_g * g_g
    h1 = o_g * jnp.tanh(c1)

    # ---- SoftDotAttention ----
    h1_c = h1.astype(cdt)
    target = jnp.dot(h1_c, win_ref[...], preferred_element_type=jnp.float32)     # (Bt, H) f32
    # 1-wide bmm(context, target): VPU multiply + lane reduce (no 1-lane MXU matvec).
    scores = jnp.sum(ctx * target[:, None, :], axis=-1)                          # (Bt, S)
    scores = jnp.where(mask > 0.5, -jnp.inf, scores)

    m = jnp.max(scores, axis=-1, keepdims=True)
    e = jnp.exp(scores - m)
    s = jnp.sum(e, axis=-1, keepdims=True)
    alpha = e / s                                                                 # (Bt, S) f32

    wctx = jnp.sum(alpha[:, :, None] * ctx, axis=1)                               # (Bt, H) f32

    # h_tilde = tanh(linear_out([wctx, h1]))  -- weight pre-split, no in-kernel concat
    h_tilde = jnp.tanh(
        jnp.dot(wctx.astype(cdt), woutc_ref[...], preferred_element_type=jnp.float32)
        + jnp.dot(h1_c, wouth_ref[...], preferred_element_type=jnp.float32))      # (Bt, H) f32

    logit = (jnp.dot(h_tilde.astype(cdt), wdec_ref[...], preferred_element_type=jnp.float32)
             + bdec_ref[...])                                                      # (Bt, V) f32

    h1_ref[...] = h1
    c1_ref[...] = c1
    alpha_ref[...] = alpha
    logit_ref[...] = logit


def prepare_params(params, compute_dtype=jnp.bfloat16):
    """One-time (per model) weight prep hoisted out of the per-step path:
    compute-dtype weight storage, folded gate bias, stacked [W_ih; W_hh],
    split linear_out weight (so no in-kernel concat)."""
    # TODO(synk): dropout (self.drop) is an inference-time no-op here; training-mode dropout
    # masks are not implemented.
    H = params['w_hh'].shape[0]
    return {
        'emb_table': params['embedding'].astype(compute_dtype),
        'w_gate': jnp.concatenate([params['w_ih'], params['w_hh']], axis=0).astype(compute_dtype),
        'b_gate': (params['b_ih'] + params['b_hh']).reshape(1, -1).astype(jnp.float32),
        'w_in': params['w_in'].astype(compute_dtype),
        'w_out_c': params['w_out'][:H].astype(compute_dtype),   # weighted-context half
        'w_out_h': params['w_out'][H:].astype(compute_dtype),   # h half
        'w_dec': params['w_dec'].astype(compute_dtype),
        'b_dec': params['b_dec'].reshape(1, -1).astype(jnp.float32),
    }


def prepare_context(ctx, ctx_mask, compute_dtype=jnp.bfloat16, max_block_b=256):
    """One-time (per decoded sequence) ctx prep hoisted out of the per-step path:
    cast to compute dtype + batch padding.  max_block_b=256 suits v6e/v7x; use 128 on v5e."""
    B, S, _ = ctx.shape
    Bt = min(_round_up(B, 8), max_block_b)      # fill MXU rows, stay sublane aligned
    B_pad = _round_up(B, Bt)
    pad = B_pad - B
    ctx_p = ctx.astype(compute_dtype)
    if ctx_mask is None:
        mask_p = jnp.zeros((B, S), jnp.float32)
    else:
        mask_p = ctx_mask.astype(jnp.float32)
    if pad:
        ctx_p = jnp.pad(ctx_p, ((0, pad), (0, 0), (0, 0)))
        mask_p = jnp.pad(mask_p, ((0, pad), (0, 0)))   # padded rows unmasked -> no all(-inf) softmax
    return {'ctx': ctx_p, 'mask': mask_p, 'batch': B, 'batch_tile': Bt, 'batch_pad': B_pad}


def speaker_decoder_step(prep, ctx_prep, previous_word, h_0, c_0, *, single_buffer_weights=True):
    """One SpeakerDecoderLSTM step (use_input_att_feed=False path).
    previous_word: (B,1) or (B,) int; h_0/c_0: (B,H). Returns (h_1, c_1, alpha, logit) f32."""
    # TODO(synk): when driving a full decode loop, fuse the timestep loop into the kernel
    # (sequential grid axis carrying h/c in VMEM scratch) so weights/ctx are DMA'd once per sequence.
    B, Bt, B_pad = ctx_prep['batch'], ctx_prep['batch_tile'], ctx_prep['batch_pad']
    ctx_p, mask_p = ctx_prep['ctx'], ctx_prep['mask']
    S = ctx_p.shape[1]
    H = h_0.shape[-1]
    E = prep['emb_table'].shape[1]
    V = prep['w_dec'].shape[1]
    cdt = prep['w_gate'].dtype
    itemsize = jnp.dtype(cdt).itemsize

    # Per-step glue (cheap): embedding gather + [emb, h0] concat for the fused gate matmul.
    emb = prep['emb_table'][previous_word.reshape(-1)]            # (B, E)
    xh = jnp.concatenate([emb, h_0.astype(cdt)], axis=1)          # (B, E+H)
    c0 = c_0.astype(jnp.float32)
    pad = B_pad - B
    if pad:
        xh = jnp.pad(xh, ((0, pad), (0, 0)))
        c0 = jnp.pad(c0, ((0, pad), (0, 0)))
    nb = B_pad // Bt

    # VMEM budget: double-buffered batch tiles + weights + double-buffered outputs, 2x headroom,
    # floored at the 32 MiB default and capped at v7x's 64 MiB physical VMEM.
    est = (2 * Bt * ((E + H) * itemsize + H * 4 + S * H * itemsize + S * 4)
           + 2 * ((E + H) * 4 * H + 3 * H * H + H * V) * itemsize
           + 2 * (4 * H + V) * 4
           + 2 * Bt * (2 * H + S + V) * 4)
    vmem_limit = int(min(64 * 1024 * 1024, max(32 * 1024 * 1024, 2 * est)))

    out_shape = (jax.ShapeDtypeStruct((B_pad, H), jnp.float32),
                 jax.ShapeDtypeStruct((B_pad, H), jnp.float32),
                 jax.ShapeDtypeStruct((B_pad, S), jnp.float32),
                 jax.ShapeDtypeStruct((B_pad, V), jnp.float32))

    def build(weight_mode):
        if weight_mode is None:
            wspec = lambda shape: pl.BlockSpec(shape, lambda b: (0, 0))
        else:
            # Constant (grid-invariant) weights: single-buffered, no dead second VMEM copy.
            wspec = lambda shape: pl.BlockSpec(shape, lambda b: (0, 0), pipeline_mode=weight_mode)
        grid_spec = pltpu.PrefetchScalarGridSpec(
            num_scalar_prefetch=0,
            grid=(nb,),   # batch-chunk axis; "parallel" shards across v7x's 2 TCs when nb >= 2
            in_specs=[
                pl.BlockSpec((Bt, E + H), lambda b: (b, 0)),      # [emb, h_0]
                pl.BlockSpec((Bt, H), lambda b: (b, 0)),          # c_0
                pl.BlockSpec((Bt, S, H), lambda b: (b, 0, 0)),    # ctx
                pl.BlockSpec((Bt, S), lambda b: (b, 0)),          # ctx_mask (float)
                wspec((E + H, 4 * H)),                            # [W_ih; W_hh]
                wspec((1, 4 * H)),                                # b_ih + b_hh
                wspec((H, H)),                                    # linear_in W
                wspec((H, H)),                                    # linear_out W (ctx half)
                wspec((H, H)),                                    # linear_out W (h half)
                wspec((H, V)),                                    # decoder2action W
                wspec((1, V)),                                    # decoder2action b
            ],
            out_specs=[
                pl.BlockSpec((Bt, H), lambda b: (b, 0)),          # h_1
                pl.BlockSpec((Bt, H), lambda b: (b, 0)),          # c_1
                pl.BlockSpec((Bt, S), lambda b: (b, 0)),          # alpha (lane-dense)
                pl.BlockSpec((Bt, V), lambda b: (b, 0)),          # logit
            ],
        )
        return pl.pallas_call(
            _speaker_decoder_kernel,
            out_shape=out_shape,
            grid_spec=grid_spec,
            compiler_params=pltpu.CompilerParams(
                dimension_semantics=("parallel",),
                vmem_limit_bytes=vmem_limit),
        )

    args = (xh, c0, ctx_p, mask_p,
            prep['w_gate'], prep['b_gate'], prep['w_in'],
            prep['w_out_c'], prep['w_out_h'], prep['w_dec'], prep['b_dec'])

    outs = None
    if single_buffer_weights:
        try:
            outs = jax.block_until_ready(build(pl.Buffered(1))(*args))
        except Exception:
            outs = None   # pipeline_mode unsupported in this build -> default double-buffering
    if outs is None:
        outs = build(None)(*args)

    h1, c1, alpha, logit = outs
    return h1[:B], c1[:B], alpha[:B], logit[:B]


def reference(params, previous_word, h_0, c_0, ctx, ctx_mask):
    """Pure-JAX f32 reference mirroring the PyTorch module (inference, dropout no-op)."""
    emb = params['embedding'][previous_word[:, 0]]
    H = h_0.shape[-1]
    gates = emb @ params['w_ih'] + params['b_ih'] + h_0 @ params['w_hh'] + params['b_hh']
    i_g = jax.nn.sigmoid(gates[:, :H])
    f_g = jax.nn.sigmoid(gates[:, H:2 * H])
    g_g = jnp.tanh(gates[:, 2 * H:3 * H])
    o_g = jax.nn.sigmoid(gates[:, 3 * H:])
    c_1 = f_g * c_0 + i_g * g_g
    h_1 = o_g * jnp.tanh(c_1)

    target = h_1 @ params['w_in']
    scores = jnp.einsum('bsh,bh->bs', ctx, target)
    scores = jnp.where(ctx_mask, -jnp.inf, scores)
    alpha = jax.nn.softmax(scores, axis=1)
    wctx = jnp.einsum('bs,bsh->bh', alpha, ctx)
    h_tilde = jnp.tanh(jnp.concatenate([wctx, h_1], axis=1) @ params['w_out'])
    logit = h_tilde @ params['w_dec'] + params['b_dec']
    return h_1, c_1, alpha, logit


if __name__ == "__main__":
    key = jax.random.PRNGKey(0)
    B = 2
    vocab_size = 64
    vocab_embedding_size = 16
    hidden_size = 32
    seq_len = 8

    ks = jax.random.split(key, 16)
    H, E, V, S = hidden_size, vocab_embedding_size, vocab_size, seq_len
    params = {
        'embedding': 0.1 * jax.random.normal(ks[0], (V, E), jnp.float32),
        'w_ih': 0.1 * jax.random.normal(ks[1], (E, 4 * H), jnp.float32),
        'w_hh': 0.1 * jax.random.normal(ks[2], (H, 4 * H), jnp.float32),
        'b_ih': 0.1 * jax.random.normal(ks[3], (1, 4 * H), jnp.float32),
        'b_hh': 0.1 * jax.random.normal(ks[4], (1, 4 * H), jnp.float32),
        'w_in': 0.1 * jax.random.normal(ks[5], (H, H), jnp.float32),
        'w_out': 0.1 * jax.random.normal(ks[6], (2 * H, H), jnp.float32),
        'w_dec': 0.1 * jax.random.normal(ks[7], (H, V), jnp.float32),
        'b_dec': 0.1 * jax.random.normal(ks[8], (1, V), jnp.float32),
    }

    previous_word = jax.random.randint(ks[9], (B, 1), 0, V)
    h_0 = 0.5 * jax.random.normal(ks[10], (B, H), jnp.float32)
    c_0 = 0.5 * jax.random.normal(ks[11], (B, H), jnp.float32)
    ctx = jax.random.normal(ks[12], (B, S, H), jnp.float32)
    # mask out the last 3 context positions of the second example
    ctx_mask = jnp.zeros((B, S), jnp.bool_).at[1, S - 3:].set(True)

    rh1, rc1, ralpha, rlogit = reference(params, previous_word, h_0, c_0, ctx, ctx_mask)

    # ---- exact-precision check (compute_dtype = f32) ----
    prep32 = prepare_params(params, jnp.float32)
    cprep32 = prepare_context(ctx, ctx_mask, jnp.float32)
    h1, c1, alpha, logit = speaker_decoder_step(prep32, cprep32, previous_word, h_0, c_0)
    h1, c1, alpha, logit = jax.block_until_ready((h1, c1, alpha, logit))
    assert h1.shape == (B, H) and c1.shape == (B, H)
    assert alpha.shape == (B, S) and logit.shape == (B, V)
    assert jnp.allclose(h1, rh1, atol=1e-4, rtol=1e-4)
    assert jnp.allclose(c1, rc1, atol=1e-4, rtol=1e-4)
    assert jnp.allclose(alpha, ralpha, atol=1e-4, rtol=1e-4)
    assert jnp.allclose(logit, rlogit, atol=1e-4, rtol=1e-4)

    # ---- default bf16 fast path (weights/ctx in bf16, f32 accumulation/elementwise) ----
    prep16 = prepare_params(params)           # bf16 weights
    cprep16 = prepare_context(ctx, ctx_mask)  # bf16 ctx, padded once per sequence
    h1b, c1b, alphab, logitb = speaker_decoder_step(prep16, cprep16, previous_word, h_0, c_0)
    h1b, c1b, alphab, logitb = jax.block_until_ready((h1b, c1b, alphab, logitb))
    assert jnp.allclose(h1b, rh1, atol=3e-2, rtol=3e-2)
    assert jnp.allclose(c1b, rc1, atol=3e-2, rtol=3e-2)
    assert jnp.allclose(alphab, ralpha, atol=3e-2, rtol=3e-2)
    assert jnp.allclose(logitb, rlogit, atol=3e-2, rtol=3e-2)

    print("KERNEL_OK")
</pallas_src>

<mosaic_0001>
module attributes {stable_mosaic.version = 11 : i64} {
  func.func @_speaker_decoder_kernel(%arg0: i32, %arg1: memref<8x48xf32, #tpu.memory_space<vmem>>, %arg2: memref<8x32xf32, #tpu.memory_space<vmem>>, %arg3: memref<8x8x32xf32, #tpu.memory_space<vmem>>, %arg4: memref<8x8xf32, #tpu.memory_space<vmem>>, %arg5: memref<48x128xf32, #tpu.memory_space<vmem>>, %arg6: memref<1x128xf32, #tpu.memory_space<vmem>>, %arg7: memref<32x32xf32, #tpu.memory_space<vmem>>, %arg8: memref<32x32xf32, #tpu.memory_space<vmem>>, %arg9: memref<32x32xf32, #tpu.memory_space<vmem>>, %arg10: memref<32x64xf32, #tpu.memory_space<vmem>>, %arg11: memref<1x64xf32, #tpu.memory_space<vmem>>, %arg12: memref<8x32xf32, #tpu.memory_space<vmem>>, %arg13: memref<8x32xf32, #tpu.memory_space<vmem>>, %arg14: memref<8x8xf32, #tpu.memory_space<vmem>>, %arg15: memref<8x64xf32, #tpu.memory_space<vmem>>) attributes {dimension_semantics = [#tpu.dimension_semantics<parallel>], iteration_bounds = array<i64: 1>, scalar_prefetch = 0 : i64, scratch_operands = 0 : i64, tpu.core_type = #tpu.core_type<tc>, window_params = [{transform_indices = @transform_0, window_bounds = array<i64: 8, 48>}, {transform_indices = @transform_1, window_bounds = array<i64: 8, 32>}, {transform_indices = @transform_2, window_bounds = array<i64: 8, 8, 32>}, {transform_indices = @transform_3, window_bounds = array<i64: 8, 8>}, {pipeline_mode = #tpu.pipeline_mode<synchronous>, transform_indices = @transform_4, window_bounds = array<i64: 48, 128>}, {pipeline_mode = #tpu.pipeline_mode<synchronous>, transform_indices = @transform_5, window_bounds = array<i64: 1, 128>}, {pipeline_mode = #tpu.pipeline_mode<synchronous>, transform_indices = @transform_6, window_bounds = array<i64: 32, 32>}, {pipeline_mode = #tpu.pipeline_mode<synchronous>, transform_indices = @transform_7, window_bounds = array<i64: 32, 32>}, {pipeline_mode = #tpu.pipeline_mode<synchronous>, transform_indices = @transform_8, window_bounds = array<i64: 32, 32>}, {pipeline_mode = #tpu.pipeline_mode<synchronous>, transform_indices = @transform_9, window_bounds = array<i64: 32, 64>}, {pipeline_mode = #tpu.pipeline_mode<synchronous>, transform_indices = @transform_10, window_bounds = array<i64: 1, 64>}, {transform_indices = @transform_11, window_bounds = array<i64: 8, 32>}, {transform_indices = @transform_12, window_bounds = array<i64: 8, 32>}, {transform_indices = @transform_13, window_bounds = array<i64: 8, 8>}, {transform_indices = @transform_14, window_bounds = array<i64: 8, 64>}]} {
    %c0 = arith.constant 0 : index
    %c0_0 = arith.constant 0 : index
    %0 = vector.load %arg1[%c0, %c0_0] : memref<8x48xf32, #tpu.memory_space<vmem>>, vector<8x48xf32>
    %c0_1 = arith.constant 0 : index
    %c0_2 = arith.constant 0 : index
    %1 = vector.load %arg2[%c0_1, %c0_2] : memref<8x32xf32, #tpu.memory_space<vmem>>, vector<8x32xf32>
    %c0_3 = arith.constant 0 : index
    %c0_4 = arith.constant 0 : index
    %c0_5 = arith.constant 0 : index
    %2 = vector.load %arg3[%c0_3, %c0_4, %c0_5] : memref<8x8x32xf32, #tpu.memory_space<vmem>>, vector<8x8x32xf32>
    %c0_6 = arith.constant 0 : index
    %c0_7 = arith.constant 0 : index
    %3 = vector.load %arg4[%c0_6, %c0_7] : memref<8x8xf32, #tpu.memory_space<vmem>>, vector<8x8xf32>
    %c0_8 = arith.constant 0 : index
    %c0_9 = arith.constant 0 : index
    %4 = vector.load %arg5[%c0_8, %c0_9] : memref<48x128xf32, #tpu.memory_space<vmem>>, vector<48x128xf32>
    %cst = arith.constant dense<0.000000e+00> : vector<8x128xf32>
    %5 = tpu.matmul %0, %4, %cst {dimension_numbers = #tpu.dot_dimension_numbers<[1], [0], [0], [1], [0, 0, 1, 1], [], []>} : vector<8x48xf32>, vector<48x128xf32>, vector<8x128xf32> -> vector<8x128xf32>
    %c0_10 = arith.constant 0 : index
    %c0_11 = arith.constant 0 : index
    %6 = vector.load %arg6[%c0_10, %c0_11] : memref<1x128xf32, #tpu.memory_space<vmem>>, vector<1x128xf32>
    %7 = vector.broadcast %6 : vector<1x128xf32> to vector<8x128xf32>
    %8 = arith.addf %5, %7 : vector<8x128xf32>
    %9 = vector.extract_strided_slice %8 {offsets = [0, 0], sizes = [8, 32], strides = [1, 1]} : vector<8x128xf32> to vector<8x32xf32>
    %10 = arith.negf %9 : vector<8x32xf32>
    %11 = math.exp %10 : vector<8x32xf32>
    %cst_12 = arith.constant 1.000000e+00 : f32
    %12 = vector.broadcast %cst_12 : f32 to vector<8x32xf32>
    %13 = arith.addf %12, %11 : vector<8x32xf32>
    %14 = arith.divf %12, %13 : vector<8x32xf32>
    %15 = vector.extract_strided_slice %8 {offsets = [0, 32], sizes = [8, 32], strides = [1, 1]} : vector<8x128xf32> to vector<8x32xf32>
    %16 = arith.negf %15 : vector<8x32xf32>
    %17 = math.exp %16 : vector<8x32xf32>
    %cst_13 = arith.constant 1.000000e+00 : f32
    %18 = vector.broadcast %cst_13 : f32 to vector<8x32xf32>
    %19 = arith.addf %18, %17 : vector<8x32xf32>
    %20 = arith.divf %18, %19 : vector<8x32xf32>
    %21 = vector.extract_strided_slice %8 {offsets = [0, 64], sizes = [8, 32], strides = [1, 1]} : vector<8x128xf32> to vector<8x32xf32>
    %22 = math.tanh %21 : vector<8x32xf32>
    %23 = vector.extract_strided_slice %8 {offsets = [0, 96], sizes = [8, 32], strides = [1, 1]} : vector<8x128xf32> to vector<8x32xf32>
    %24 = arith.negf %23 : vector<8x32xf32>
    %25 = math.exp %24 : vector<8x32xf32>
    %cst_14 = arith.constant 1.000000e+00 : f32
    %26 = vector.broadcast %cst_14 : f32 to vector<8x32xf32>
    %27 = arith.addf %26, %25 : vector<8x32xf32>
    %28 = arith.divf %26, %27 : vector<8x32xf32>
    %29 = arith.mulf %20, %1 : vector<8x32xf32>
    %30 = arith.mulf %14, %22 : vector<8x32xf32>
    %31 = arith.addf %29, %30 : vector<8x32xf32>
    %32 = math.tanh %31 : vector<8x32xf32>
    %33 = arith.mulf %28, %32 : vector<8x32xf32>
    %c0_15 = arith.constant 0 : index
    %c0_16 = arith.constant 0 : index
    %34 = vector.load %arg7[%c0_15, %c0_16] : memref<32x32xf32, #tpu.memory_space<vmem>>, vector<32x32xf32>
    %cst_17 = arith.constant dense<0.000000e+00> : vector<8x32xf32>
    %35 = tpu.matmul %33, %34, %cst_17 {dimension_numbers = #tpu.dot_dimension_numbers<[1], [0], [0], [1], [0, 0, 1, 1], [], []>} : vector<8x32xf32>, vector<32x32xf32>, vector<8x32xf32> -> vector<8x32xf32>
    %36 = vector.shape_cast %35 : vector<8x32xf32> to vector<8x1x32xf32>
    %37 = vector.broadcast %36 : vector<8x1x32xf32> to vector<8x8x32xf32>
    %38 = arith.mulf %2, %37 : vector<8x8x32xf32>
    %cst_18 = arith.constant dense<0.000000e+00> : vector<8x8xf32>
    %39 = vector.multi_reduction <add>, %38, %cst_18 [2] : vector<8x8x32xf32> to vector<8x8xf32>
    %cst_19 = arith.constant 5.000000e-01 : f32
    %40 = vector.broadcast %cst_19 : f32 to vector<8x8xf32>
    %41 = arith.cmpf ogt, %3, %40 : vector<8x8xf32>
    %cst_20 = arith.constant 0xFF800000 : f32
    %42 = vector.broadcast %cst_20 : f32 to vector<8x8xf32>
    %43 = arith.select %41, %42, %39 : vector<8x8xi1>, vector<8x8xf32>
    %cst_21 = arith.constant dense<0xFF800000> : vector<8xf32>
    %44 = vector.multi_reduction <maximumf>, %43, %cst_21 [1] : vector<8x8xf32> to vector<8xf32>
    %45 = vector.shape_cast %44 : vector<8xf32> to vector<8x1xf32>
    %46 = vector.broadcast %45 : vector<8x1xf32> to vector<8x8xf32>
    %47 = arith.subf %43, %46 : vector<8x8xf32>
    %48 = math.exp %47 : vector<8x8xf32>
    %cst_22 = arith.constant dense<0.000000e+00> : vector<8xf32>
    %49 = vector.multi_reduction <add>, %48, %cst_22 [1] : vector<8x8xf32> to vector<8xf32>
    %50 = vector.shape_cast %49 : vector<8xf32> to vector<8x1xf32>
    %51 = vector.broadcast %50 : vector<8x1xf32> to vector<8x8xf32>
    %52 = arith.divf %48, %51 : vector<8x8xf32>
    %53 = vector.shape_cast %52 : vector<8x8xf32> to vector<8x8x1xf32>
    %54 = vector.broadcast %53 : vector<8x8x1xf32> to vector<8x8x32xf32>
    %55 = arith.mulf %54, %2 : vector<8x8x32xf32>
    %cst_23 = arith.constant dense<0.000000e+00> : vector<8x32xf32>
    %56 = vector.multi_reduction <add>, %55, %cst_23 [1] : vector<8x8x32xf32> to vector<8x32xf32>
    %c0_24 = arith.constant 0 : index
    %c0_25 = arith.constant 0 : index
    %57 = vector.load %arg8[%c0_24, %c0_25] : memref<32x32xf32, #tpu.memory_space<vmem>>, vector<32x32xf32>
    %cst_26 = arith.constant dense<0.000000e+00> : vector<8x32xf32>
    %58 = tpu.matmul %56, %57, %cst_26 {dimension_numbers = #tpu.dot_dimension_numbers<[1], [0], [0], [1], [0, 0, 1, 1], [], []>} : vector<8x32xf32>, vector<32x32xf32>, vector<8x32xf32> -> vector<8x32xf32>
    %c0_27 = arith.constant 0 : index
    %c0_28 = arith.constant 0 : index
    %59 = vector.load %arg9[%c0_27, %c0_28] : memref<32x32xf32, #tpu.memory_space<vmem>>, vector<32x32xf32>
    %cst_29 = arith.constant dense<0.000000e+00> : vector<8x32xf32>
    %60 = tpu.matmul %33, %59, %cst_29 {dimension_numbers = #tpu.dot_dimension_numbers<[1], [0], [0], [1], [0, 0, 1, 1], [], []>} : vector<8x32xf32>, vector<32x32xf32>, vector<8x32xf32> -> vector<8x32xf32>
    %61 = arith.addf %58, %60 : vector<8x32xf32>
    %62 = math.tanh %61 : vector<8x32xf32>
    %c0_30 = arith.constant 0 : index
    %c0_31 = arith.constant 0 : index
    %63 = vector.load %arg10[%c0_30, %c0_31] : memref<32x64xf32, #tpu.memory_space<vmem>>, vector<32x64xf32>
    %cst_32 = arith.constant dense<0.000000e+00> : vector<8x64xf32>
    %64 = tpu.matmul %62, %63, %cst_32 {dimension_numbers = #tpu.dot_dimension_numbers<[1], [0], [0], [1], [0, 0, 1, 1], [], []>} : vector<8x32xf32>, vector<32x64xf32>, vector<8x64xf32> -> vector<8x64xf32>
    %c0_33 = arith.constant 0 : index
    %c0_34 = arith.constant 0 : index
    %65 = vector.load %arg11[%c0_33, %c0_34] : memref<1x64xf32, #tpu.memory_space<vmem>>, vector<1x64xf32>
    %66 = vector.broadcast %65 : vector<1x64xf32> to vector<8x64xf32>
    %67 = arith.addf %64, %66 : vector<8x64xf32>
    %c0_35 = arith.constant 0 : index
    %c0_36 = arith.constant 0 : index
    %68 = vector.load %arg12[%c0_35, %c0_36] : memref<8x32xf32, #tpu.memory_space<vmem>>, vector<8x32xf32>
    tpu.vector_store %arg12[%c0_35, %c0_36], %33 {strides = array<i32>} : memref<8x32xf32, #tpu.memory_space<vmem>>, vector<8x32xf32>,
    %c0_37 = arith.constant 0 : index
    %c0_38 = arith.constant 0 : index
    %69 = vector.load %arg13[%c0_37, %c0_38] : memref<8x32xf32, #tpu.memory_space<vmem>>, vector<8x32xf32>
    tpu.vector_store %arg13[%c0_37, %c0_38], %31 {strides = array<i32>} : memref<8x32xf32, #tpu.memory_space<vmem>>, vector<8x32xf32>,
    %c0_39 = arith.constant 0 : index
    %c0_40 = arith.constant 0 : index
    %70 = vector.load %arg14[%c0_39, %c0_40] : memref<8x8xf32, #tpu.memory_space<vmem>>, vector<8x8xf32>
    tpu.vector_store %arg14[%c0_39, %c0_40], %52 {strides = array<i32>} : memref<8x8xf32, #tpu.memory_space<vmem>>, vector<8x8xf32>,
    %c0_41 = arith.constant 0 : index
    %c0_42 = arith.constant 0 : index
    %71 = vector.load %arg15[%c0_41, %c0_42] : memref<8x64xf32, #tpu.memory_space<vmem>>, vector<8x64xf32>
    tpu.vector_store %arg15[%c0_41, %c0_42], %67 {strides = array<i32>} : memref<8x64xf32, #tpu.memory_space<vmem>>, vector<8x64xf32>,
    return
  }
  func.func @transform_0(%arg0: i32) -> (i32, i32) {
    %c0_i32 = arith.constant 0 : i32
    %c0_i32_0 = arith.constant 0 : i32
    return %arg0, %c0_i32 : i32, i32
  }
  func.func @transform_1(%arg0: i32) -> (i32, i32) {
    %c0_i32 = arith.constant 0 : i32
    %c0_i32_0 = arith.constant 0 : i32
    return %arg0, %c0_i32 : i32, i32
  }
  func.func @transform_2(%arg0: i32) -> (i32, i32, i32) {
    %c0_i32 = arith.constant 0 : i32
    %c0_i32_0 = arith.constant 0 : i32
    %c0_i32_1 = arith.constant 0 : i32
    return %arg0, %c0_i32, %c0_i32_0 : i32, i32, i32
  }
  func.func @transform_3(%arg0: i32) -> (i32, i32) {
    %c0_i32 = arith.constant 0 : i32
    %c0_i32_0 = arith.constant 0 : i32
    return %arg0, %c0_i32 : i32, i32
  }
  func.func @transform_4(%arg0: i32) -> (i32, i32) {
    %c0_i32 = arith.constant 0 : i32
    %c0_i32_0 = arith.constant 0 : i32
    %c0_i32_1 = arith.constant 0 : i32
    return %c0_i32, %c0_i32_0 : i32, i32
  }
  func.func @transform_5(%arg0: i32) -> (i32, i32) {
    %c0_i32 = arith.constant 0 : i32
    %c0_i32_0 = arith.constant 0 : i32
    %c0_i32_1 = arith.constant 0 : i32
    return %c0_i32, %c0_i32_0 : i32, i32
  }
  func.func @transform_6(%arg0: i32) -> (i32, i32) {
    %c0_i32 = arith.constant 0 : i32
    %c0_i32_0 = arith.constant 0 : i32
    %c0_i32_1 = arith.constant 0 : i32
    return %c0_i32, %c0_i32_0 : i32, i32
  }
  func.func @transform_7(%arg0: i32) -> (i32, i32) {
    %c0_i32 = arith.constant 0 : i32
    %c0_i32_0 = arith.constant 0 : i32
    %c0_i32_1 = arith.constant 0 : i32
    return %c0_i32, %c0_i32_0 : i32, i32
  }
  func.func @transform_8(%arg0: i32) -> (i32, i32) {
    %c0_i32 = arith.constant 0 : i32
    %c0_i32_0 = arith.constant 0 : i32
    %c0_i32_1 = arith.constant 0 : i32
    return %c0_i32, %c0_i32_0 : i32, i32
  }
  func.func @transform_9(%arg0: i32) -> (i32, i32) {
    %c0_i32 = arith.constant 0 : i32
    %c0_i32_0 = arith.constant 0 : i32
    %c0_i32_1 = arith.constant 0 : i32
    return %c0_i32, %c0_i32_0 : i32, i32
  }
  func.func @transform_10(%arg0: i32) -> (i32, i32) {
    %c0_i32 = arith.constant 0 : i32
    %c0_i32_0 = arith.constant 0 : i32
    %c0_i32_1 = arith.constant 0 : i32
    return %c0_i32, %c0_i32_0 : i32, i32
  }
  func.func @transform_11(%arg0: i32) -> (i32, i32) {
    %c0_i32 = arith.constant 0 : i32
    %c0_i32_0 = arith.constant 0 : i32
    return %arg0, %c0_i32 : i32, i32
  }
  func.func @transform_12(%arg0: i32) -> (i32, i32) {
    %c0_i32 = arith.constant 0 : i32
    %c0_i32_0 = arith.constant 0 : i32
    return %arg0, %c0_i32 : i32, i32
  }
  func.func @transform_13(%arg0: i32) -> (i32, i32) {
    %c0_i32 = arith.constant 0 : i32
    %c0_i32_0 = arith.constant 0 : i32
    return %arg0, %c0_i32 : i32, i32
  }
  func.func @transform_14(%arg0: i32) -> (i32, i32) {
    %c0_i32 = arith.constant 0 : i32
    %c0_i32_0 = arith.constant 0 : i32
    return %arg0, %c0_i32 : i32, i32
  }
}

module attributes {stable_mosaic.version = 11 : i64} {
  func.func @_speaker_decoder_kernel(%arg0: i32, %arg1: memref<8x48xf32, #tpu.memory_space<vmem>>, %arg2: memref<8x32xf32, #tpu.memory_space<vmem>>, %arg3: memref<8x8x32xf32, #tpu.memory_space<vmem>>, %arg4: memref<8x8xf32, #tpu.memory_space<vmem>>, %arg5: memref<48x128xf32, #tpu.memory_space<vmem>>, %arg6: memref<1x128xf32, #tpu.memory_space<vmem>>, %arg7: memref<32x32xf32, #tpu.memory_space<vmem>>, %arg8: memref<32x32xf32, #tpu.memory_space<vmem>>, %arg9: memref<32x32xf32, #tpu.memory_space<vmem>>, %arg10: memref<32x64xf32, #tpu.memory_space<vmem>>, %arg11: memref<1x64xf32, #tpu.memory_space<vmem>>, %arg12: memref<8x32xf32, #tpu.memory_space<vmem>>, %arg13: memref<8x32xf32, #tpu.memory_space<vmem>>, %arg14: memref<8x8xf32, #tpu.memory_space<vmem>>, %arg15: memref<8x64xf32, #tpu.memory_space<vmem>>) attributes {dimension_semantics = [#tpu.dimension_semantics<parallel>], iteration_bounds = array<i64: 1>, scalar_prefetch = 0 : i64, scratch_operands = 0 : i64, tpu.core_type = #tpu.core_type<tc>, window_params = [{transform_indices = @transform_0, window_bounds = array<i64: 8, 48>}, {transform_indices = @transform_1, window_bounds = array<i64: 8, 32>}, {transform_indices = @transform_2, window_bounds = array<i64: 8, 8, 32>}, {transform_indices = @transform_3, window_bounds = array<i64: 8, 8>}, {pipeline_mode = #tpu.pipeline_mode<synchronous>, transform_indices = @transform_4, window_bounds = array<i64: 48, 128>}, {pipeline_mode = #tpu.pipeline_mode<synchronous>, transform_indices = @transform_5, window_bounds = array<i64: 1, 128>}, {pipeline_mode = #tpu.pipeline_mode<synchronous>, transform_indices = @transform_6, window_bounds = array<i64: 32, 32>}, {pipeline_mode = #tpu.pipeline_mode<synchronous>, transform_indices = @transform_7, window_bounds = array<i64: 32, 32>}, {pipeline_mode = #tpu.pipeline_mode<synchronous>, transform_indices = @transform_8, window_bounds = array<i64: 32, 32>}, {pipeline_mode = #tpu.pipeline_mode<synchronous>, transform_indices = @transform_9, window_bounds = array<i64: 32, 64>}, {pipeline_mode = #tpu.pipeline_mode<synchronous>, transform_indices = @transform_10, window_bounds = array<i64: 1, 64>}, {transform_indices = @transform_11, window_bounds = array<i64: 8, 32>}, {transform_indices = @transform_12, window_bounds = array<i64: 8, 32>}, {transform_indices = @transform_13, window_bounds = array<i64: 8, 8>}, {transform_indices = @transform_14, window_bounds = array<i64: 8, 64>}]} {
    %c0 = arith.constant 0 : index
    %c0_0 = arith.constant 0 : index
    %0 = vector.load %arg1[%c0, %c0_0] : memref<8x48xf32, #tpu.memory_space<vmem>>, vector<8x48xf32>
    %c0_1 = arith.constant 0 : index
    %c0_2 = arith.constant 0 : index
    %1 = vector.load %arg2[%c0_1, %c0_2] : memref<8x32xf32, #tpu.memory_space<vmem>>, vector<8x32xf32>
    %c0_3 = arith.constant 0 : index
    %c0_4 = arith.constant 0 : index
    %c0_5 = arith.constant 0 : index
    %2 = vector.load %arg3[%c0_3, %c0_4, %c0_5] : memref<8x8x32xf32, #tpu.memory_space<vmem>>, vector<8x8x32xf32>
    %c0_6 = arith.constant 0 : index
    %c0_7 = arith.constant 0 : index
    %3 = vector.load %arg4[%c0_6, %c0_7] : memref<8x8xf32, #tpu.memory_space<vmem>>, vector<8x8xf32>
    %c0_8 = arith.constant 0 : index
    %c0_9 = arith.constant 0 : index
    %4 = vector.load %arg5[%c0_8, %c0_9] : memref<48x128xf32, #tpu.memory_space<vmem>>, vector<48x128xf32>
    %cst = arith.constant dense<0.000000e+00> : vector<8x128xf32>
    %5 = tpu.matmul %0, %4, %cst {dimension_numbers = #tpu.dot_dimension_numbers<[1], [0], [0], [1], [0, 0, 1, 1], [], []>} : vector<8x48xf32>, vector<48x128xf32>, vector<8x128xf32> -> vector<8x128xf32>
    %c0_10 = arith.constant 0 : index
    %c0_11 = arith.constant 0 : index
    %6 = vector.load %arg6[%c0_10, %c0_11] : memref<1x128xf32, #tpu.memory_space<vmem>>, vector<1x128xf32>
    %7 = vector.broadcast %6 : vector<1x128xf32> to vector<8x128xf32>
    %8 = arith.addf %5, %7 : vector<8x128xf32>
    %9 = vector.extract_strided_slice %8 {offsets = [0, 0], sizes = [8, 32], strides = [1, 1]} : vector<8x128xf32> to vector<8x32xf32>
    %10 = arith.negf %9 : vector<8x32xf32>
    %11 = math.exp %10 : vector<8x32xf32>
    %cst_12 = arith.constant 1.000000e+00 : f32
    %12 = vector.broadcast %cst_12 : f32 to vector<8x32xf32>
    %13 = arith.addf %12, %11 : vector<8x32xf32>
    %14 = arith.divf %12, %13 : vector<8x32xf32>
    %15 = vector.extract_strided_slice %8 {offsets = [0, 32], sizes = [8, 32], strides = [1, 1]} : vector<8x128xf32> to vector<8x32xf32>
    %16 = arith.negf %15 : vector<8x32xf32>
    %17 = math.exp %16 : vector<8x32xf32>
    %cst_13 = arith.constant 1.000000e+00 : f32
    %18 = vector.broadcast %cst_13 : f32 to vector<8x32xf32>
    %19 = arith.addf %18, %17 : vector<8x32xf32>
    %20 = arith.divf %18, %19 : vector<8x32xf32>
    %21 = vector.extract_strided_slice %8 {offsets = [0, 64], sizes = [8, 32], strides = [1, 1]} : vector<8x128xf32> to vector<8x32xf32>
    %22 = math.tanh %21 : vector<8x32xf32>
    %23 = vector.extract_strided_slice %8 {offsets = [0, 96], sizes = [8, 32], strides = [1, 1]} : vector<8x128xf32> to vector<8x32xf32>
    %24 = arith.negf %23 : vector<8x32xf32>
    %25 = math.exp %24 : vector<8x32xf32>
    %cst_14 = arith.constant 1.000000e+00 : f32
    %26 = vector.broadcast %cst_14 : f32 to vector<8x32xf32>
    %27 = arith.addf %26, %25 : vector<8x32xf32>
    %28 = arith.divf %26, %27 : vector<8x32xf32>
    %29 = arith.mulf %20, %1 : vector<8x32xf32>
    %30 = arith.mulf %14, %22 : vector<8x32xf32>
    %31 = arith.addf %29, %30 : vector<8x32xf32>
    %32 = math.tanh %31 : vector<8x32xf32>
    %33 = arith.mulf %28, %32 : vector<8x32xf32>
    %c0_15 = arith.constant 0 : index
    %c0_16 = arith.constant 0 : index
    %34 = vector.load %arg7[%c0_15, %c0_16] : memref<32x32xf32, #tpu.memory_space<vmem>>, vector<32x32xf32>
    %cst_17 = arith.constant dense<0.000000e+00> : vector<8x32xf32>
    %35 = tpu.matmul %33, %34, %cst_17 {dimension_numbers = #tpu.dot_dimension_numbers<[1], [0], [0], [1], [0, 0, 1, 1], [], []>} : vector<8x32xf32>, vector<32x32xf32>, vector<8x32xf32> -> vector<8x32xf32>
    %36 = vector.shape_cast %35 : vector<8x32xf32> to vector<8x1x32xf32>
    %37 = vector.broadcast %36 : vector<8x1x32xf32> to vector<8x8x32xf32>
    %38 = arith.mulf %2, %37 : vector<8x8x32xf32>
    %cst_18 = arith.constant dense<0.000000e+00> : vector<8x8xf32>
    %39 = vector.multi_reduction <add>, %38, %cst_18 [2] : vector<8x8x32xf32> to vector<8x8xf32>
    %cst_19 = arith.constant 5.000000e-01 : f32
    %40 = vector.broadcast %cst_19 : f32 to vector<8x8xf32>
    %41 = arith.cmpf ogt, %3, %40 : vector<8x8xf32>
    %cst_20 = arith.constant 0xFF800000 : f32
    %42 = vector.broadcast %cst_20 : f32 to vector<8x8xf32>
    %43 = arith.select %41, %42, %39 : vector<8x8xi1>, vector<8x8xf32>
    %cst_21 = arith.constant dense<0xFF800000> : vector<8xf32>
    %44 = vector.multi_reduction <maximumf>, %43, %cst_21 [1] : vector<8x8xf32> to vector<8xf32>
    %45 = vector.shape_cast %44 : vector<8xf32> to vector<8x1xf32>
    %46 = vector.broadcast %45 : vector<8x1xf32> to vector<8x8xf32>
    %47 = arith.subf %43, %46 : vector<8x8xf32>
    %48 = math.exp %47 : vector<8x8xf32>
    %cst_22 = arith.constant dense<0.000000e+00> : vector<8xf32>
    %49 = vector.multi_reduction <add>, %48, %cst_22 [1] : vector<8x8xf32> to vector<8xf32>
    %50 = vector.shape_cast %49 : vector<8xf32> to vector<8x1xf32>
    %51 = vector.broadcast %50 : vector<8x1xf32> to vector<8x8xf32>
    %52 = arith.divf %48, %51 : vector<8x8xf32>
    %53 = vector.shape_cast %52 : vector<8x8xf32> to vector<8x8x1xf32>
    %54 = vector.broadcast %53 : vector<8x8x1xf32> to vector<8x8x32xf32>
    %55 = arith.mulf %54, %2 : vector<8x8x32xf32>
    %cst_23 = arith.constant dense<0.000000e+00> : vector<8x32xf32>
    %56 = vector.multi_reduction <add>, %55, %cst_23 [1] : vector<8x8x32xf32> to vector<8x32xf32>
    %c0_24 = arith.constant 0 : index
    %c0_25 = arith.constant 0 : index
    %57 = vector.load %arg8[%c0_24, %c0_25] : memref<32x32xf32, #tpu.memory_space<vmem>>, vector<32x32xf32>
    %cst_26 = arith.constant dense<0.000000e+00> : vector<8x32xf32>
    %58 = tpu.matmul %56, %57, %cst_26 {dimension_numbers = #tpu.dot_dimension_numbers<[1], [0], [0], [1], [0, 0, 1, 1], [], []>} : vector<8x32xf32>, vector<32x32xf32>, vector<8x32xf32> -> vector<8x32xf32>
    %c0_27 = arith.constant 0 : index
    %c0_28 = arith.constant 0 : index
    %59 = vector.load %arg9[%c0_27, %c0_28] : memref<32x32xf32, #tpu.memory_space<vmem>>, vector<32x32xf32>
    %cst_29 = arith.constant dense<0.000000e+00> : vector<8x32xf32>
    %60 = tpu.matmul %33, %59, %cst_29 {dimension_numbers = #tpu.dot_dimension_numbers<[1], [0], [0], [1], [0, 0, 1, 1], [], []>} : vector<8x32xf32>, vector<32x32xf32>, vector<8x32xf32> -> vector<8x32xf32>
    %61 = arith.addf %58, %60 : vector<8x32xf32>
    %62 = math.tanh %61 : vector<8x32xf32>
    %c0_30 = arith.constant 0 : index
    %c0_31 = arith.constant 0 : index
    %63 = vector.load %arg10[%c0_30, %c0_31] : memref<32x64xf32, #tpu.memory_space<vmem>>, vector<32x64xf32>
    %cst_32 = arith.constant dense<0.000000e+00> : vector<8x64xf32>
    %64 = tpu.matmul %62, %63, %cst_32 {dimension_numbers = #tpu.dot_dimension_numbers<[1], [0], [0], [1], [0, 0, 1, 1], [], []>} : vector<8x32xf32>, vector<32x64xf32>, vector<8x64xf32> -> vector<8x64xf32>
    %c0_33 = arith.constant 0 : index
    %c0_34 = arith.constant 0 : index
    %65 = vector.load %arg11[%c0_33, %c0_34] : memref<1x64xf32, #tpu.memory_space<vmem>>, vector<1x64xf32>
    %66 = vector.broadcast %65 : vector<1x64xf32> to vector<8x64xf32>
    %67 = arith.addf %64, %66 : vector<8x64xf32>
    %c0_35 = arith.constant 0 : index
    %c0_36 = arith.constant 0 : index
    %68 = vector.load %arg12[%c0_35, %c0_36] : memref<8x32xf32, #tpu.memory_space<vmem>>, vector<8x32xf32>
    tpu.vector_store %arg12[%c0_35, %c0_36], %33 {strides = array<i32>} : memref<8x32xf32, #tpu.memory_space<vmem>>, vector<8x32xf32>,
    %c0_37 = arith.constant 0 : index
    %c0_38 = arith.constant 0 : index
    %69 = vector.load %arg13[%c0_37, %c0_38] : memref<8x32xf32, #tpu.memory_space<vmem>>, vector<8x32xf32>
    tpu.vector_store %arg13[%c0_37, %c0_38], %31 {strides = array<i32>} : memref<8x32xf32, #tpu.memory_space<vmem>>, vector<8x32xf32>,
    %c0_39 = arith.constant 0 : index
    %c0_40 = arith.constant 0 : index
    %70 = vector.load %arg14[%c0_39, %c0_40] : memref<8x8xf32, #tpu.memory_space<vmem>>, vector<8x8xf32>
    tpu.vector_store %arg14[%c0_39, %c0_40], %52 {strides = array<i32>} : memref<8x8xf32, #tpu.memory_space<vmem>>, vector<8x8xf32>,
    %c0_41 = arith.constant 0 : index
    %c0_42 = arith.constant 0 : index
    %71 = vector.load %arg15[%c0_41, %c0_42] : memref<8x64xf32, #tpu.memory_space<vmem>>, vector<8x64xf32>
    tpu.vector_store %arg15[%c0_41, %c0_42], %67 {strides = array<i32>} : memref<8x64xf32, #tpu.memory_space<vmem>>, vector<8x64xf32>,
    return
  }
  func.func @transform_0(%arg0: i32) -> (i32, i32) {
    %c0_i32 = arith.constant 0 : i32
    %c0_i32_0 = arith.constant 0 : i32
    return %arg0, %c0_i32 : i32, i32
  }
  func.func @transform_1(%arg0: i32) -> (i32, i32) {
    %c0_i32 = arith.constant 0 : i32
    %c0_i32_0 = arith.constant 0 : i32
    return %arg0, %c0_i32 : i32, i32
  }
  func.func @transform_2(%arg0: i32) -> (i32, i32, i32) {
    %c0_i32 = arith.constant 0 : i32
    %c0_i32_0 = arith.constant 0 : i32
    %c0_i32_1 = arith.constant 0 : i32
    return %arg0, %c0_i32, %c0_i32_0 : i32, i32, i32
  }
  func.func @transform_3(%arg0: i32) -> (i32, i32) {
    %c0_i32 = arith.constant 0 : i32
    %c0_i32_0 = arith.constant 0 : i32
    return %arg0, %c0_i32 : i32, i32
  }
  func.func @transform_4(%arg0: i32) -> (i32, i32) {
    %c0_i32 = arith.constant 0 : i32
    %c0_i32_0 = arith.constant 0 : i32
    %c0_i32_1 = arith.constant 0 : i32
    return %c0_i32, %c0_i32_0 : i32, i32
  }
  func.func @transform_5(%arg0: i32) -> (i32, i32) {
    %c0_i32 = arith.constant 0 : i32
    %c0_i32_0 = arith.constant 0 : i32
    %c0_i32_1 = arith.constant 0 : i32
    return %c0_i32, %c0_i32_0 : i32, i32
  }
  func.func @transform_6(%arg0: i32) -> (i32, i32) {
    %c0_i32 = arith.constant 0 : i32
    %c0_i32_0 = arith.constant 0 : i32
    %c0_i32_1 = arith.constant 0 : i32
    return %c0_i32, %c0_i32_0 : i32, i32
  }
  func.func @transform_7(%arg0: i32) -> (i32, i32) {
    %c0_i32 = arith.constant 0 : i32
    %c0_i32_0 = arith.constant 0 : i32
    %c0_i32_1 = arith.constant 0 : i32
    return %c0_i32, %c0_i32_0 : i32, i32
  }
  func.func @transform_8(%arg0: i32) -> (i32, i32) {
    %c0_i32 = arith.constant 0 : i32
    %c0_i32_0 = arith.constant 0 : i32
    %c0_i32_1 = arith.constant 0 : i32
    return %c0_i32, %c0_i32_0 : i32, i32
  }
  func.func @transform_9(%arg0: i32) -> (i32, i32) {
    %c0_i32 = arith.constant 0 : i32
    %c0_i32_0 = arith.constant 0 : i32
    %c0_i32_1 = arith.constant 0 : i32
    return %c0_i32, %c0_i32_0 : i32, i32
  }
  func.func @transform_10(%arg0: i32) -> (i32, i32) {
    %c0_i32 = arith.constant 0 : i32
    %c0_i32_0 = arith.constant 0 : i32
    %c0_i32_1 = arith.constant 0 : i32
    return %c0_i32, %c0_i32_0 : i32, i32
  }
  func.func @transform_11(%arg0: i32) -> (i32, i32) {
    %c0_i32 = arith.constant 0 : i32
    %c0_i32_0 = arith.constant 0 : i32
    return %arg0, %c0_i32 : i32, i32
  }
  func.func @transform_12(%arg0: i32) -> (i32, i32) {
    %c0_i32 = arith.constant 0 : i32
    %c0_i32_0 = arith.constant 0 : i32
    return %arg0, %c0_i32 : i32, i32
  }
  func.func @transform_13(%arg0: i32) -> (i32, i32) {
    %c0_i32 = arith.constant 0 : i32
    %c0_i32_0 = arith.constant 0 : i32
    return %arg0, %c0_i32 : i32, i32
  }
  func.func @transform_14(%arg0: i32) -> (i32, i32) {
    %c0_i32 = arith.constant 0 : i32
    %c0_i32_0 = arith.constant 0 : i32
    return %arg0, %c0_i32 : i32, i32
  }
}

</mosaic_0001>

<llo_original>
// kernel: tpu_custom_call.1
$region0: #{tpu_custom_call.1}
  #allocation0 [shape = 'u32[]', space=smem, size = 0x4, offset = 0x4, fixed_abs, tag = 'smem constant byte address 0x4 - core index']
  #allocation1 [shape = 'u32[72,128]{1,0:T(1,128)}', space=vmem, size = 0x9000, scoped, tag = 'internal scratch']
  %s0 = inlined_call_operand.hbm [shape: f32[8,48], index: 0, kind: input, shape index: {}]
  %s1 = inlined_call_operand.hbm [shape: f32[8,32], index: 1, kind: input, shape index: {}]
  %s2 = inlined_call_operand.hbm [shape: f32[8,8,32], index: 2, kind: input, shape index: {}]
  %s3 = inlined_call_operand.hbm [shape: f32[8,8], index: 3, kind: input, shape index: {}]
  %s4 = inlined_call_operand.hbm [shape: f32[48,128], index: 4, kind: input, shape index: {}]
  %s5 = inlined_call_operand.vmem [shape: f32[1,128], index: 5, kind: input, shape index: {}]
  %s6 = inlined_call_operand.hbm [shape: f32[32,32], index: 6, kind: input, shape index: {}]
  %s7 = inlined_call_operand.hbm [shape: f32[32,32], index: 7, kind: input, shape index: {}]
  %s8 = inlined_call_operand.hbm [shape: f32[32,32], index: 8, kind: input, shape index: {}]
  %s9 = inlined_call_operand.hbm [shape: f32[32,64], index: 9, kind: input, shape index: {}]
  %s10 = inlined_call_operand.vmem [shape: f32[1,64], index: 10, kind: input, shape index: {}]
  %s11 = inlined_call_operand.hbm [shape: f32[8,32], index: 11, kind: output, shape index: {0}]
  %s12 = inlined_call_operand.hbm [shape: f32[8,32], index: 12, kind: output, shape index: {1}]
  %s13 = inlined_call_operand.hbm [shape: f32[8,8], index: 13, kind: output, shape index: {2}]
  %s14 = inlined_call_operand.hbm [shape: f32[8,64], index: 14, kind: output, shape index: {3}]
  %15 = xla_tuple %s11, %s12, %s13, %s14
  %s16 = sld [smem:[#allocation0]]
  $region114: #{tpu_custom_call.1} parent=0
    _
  %s18 = ssub.s32 1, %s16
  %s19 = scalar_select 0, %s18, %s16
  $region1: #{tpu_custom_call.1} parent=0
    #allocation2 [shape = 'u8[4096]{0}', space=vmem, size = 0x1000, scoped, tag = 'input window, operand 0, single buffered']
    #allocation3 [shape = 's32[1]{0}', space=sflag, size = 0x4, scoped, tag = 'scoped memory for tpu_custom_call.1']
    #allocation4 [shape = 's32[1]{0}', space=sflag, size = 0x4, scoped, tag = 'scoped memory for tpu_custom_call.1']
    #allocation5 [shape = 'u8[4096]{0}', space=vmem, size = 0x1000, scoped, tag = 'input window, operand 1, single buffered']
    #allocation6 [shape = 's32[1]{0}', space=sflag, size = 0x4, scoped, tag = 'scoped memory for tpu_custom_call.1']
    #allocation7 [shape = 'u8[32768]{0}', space=vmem, size = 0x8000, scoped, tag = 'input window, operand 2, single buffered']
    #allocation8 [shape = 'u8[4096]{0}', space=vmem, size = 0x1000, scoped, tag = 'input window, operand 3, single buffered']
    #allocation9 [shape = 's32[1]{0}', space=sflag, size = 0x4, scoped, tag = 'scoped memory for tpu_custom_call.1']
    #allocation10 [shape = 'u8[24576]{0}', space=vmem, size = 0x6000, scoped, tag = 'input window, operand 4, single buffered']
    #allocation11 [shape = 'u8[16384]{0}', space=vmem, size = 0x4000, scoped, tag = 'input window, operand 6, single buffered']
    #allocation12 [shape = 's32[1]{0}', space=sflag, size = 0x4, scoped, tag = 'scoped memory for tpu_custom_call.1']
    #allocation13 [shape = 'u8[16384]{0}', space=vmem, size = 0x4000, scoped, tag = 'input window, operand 7, single buffered']
    #allocation14 [shape = 'u8[16384]{0}', space=vmem, size = 0x4000, scoped, tag = 'input window, operand 8, single buffered']
    #allocation15 [shape = 's32[1]{0}', space=sflag, size = 0x4, scoped, tag = 'scoped memory for tpu_custom_call.1']
    #allocation16 [shape = 'u8[16384]{0}', space=vmem, size = 0x4000, scoped, tag = 'input window, operand 9, single buffered']
    #allocation17 [shape = 'u8[4096]{0}', space=vmem, size = 0x1000, scoped, tag = 'output window, operand 0, single buffered']
    #allocation18 [shape = 'u8[4096]{0}', space=vmem, size = 0x1000, scoped, tag = 'output window, operand 1, single buffered']
    #allocation19 [shape = 's32[1]{0}', space=sflag, size = 0x4, scoped, tag = 'scoped memory for tpu_custom_call.1']
    #allocation20 [shape = 'u8[4096]{0}', space=vmem, size = 0x1000, scoped, tag = 'output window, operand 2, single buffered']
    #allocation21 [shape = 'u8[4096]{0}', space=vmem, size = 0x1000, scoped, tag = 'output window, operand 3, single buffered']
    #allocation22 [shape = 's32[1]{0}', space=sflag, size = 0x4, scoped, tag = 'scoped memory for tpu_custom_call.1']
    %20 = vsyncpa [#allocation3], 0
    %21 = vsyncpa [#allocation6], 0
    %22 = vsyncpa [#allocation9], 0
    %23 = vsyncpa [#allocation12], 0
    %24 = vsyncpa [#allocation15], 0
    %25 = vsyncpa [#allocation4], 0
    %26 = vsyncpa [#allocation19], 0
    %27 = vsyncpa [#allocation22], 0
    // Predicated region
    $region2: #{tpu_custom_call.1} parent=1 // pred_check
      _
    $region3: #{tpu_custom_call.1} parent=1 // pred_check_branch
      %29 = sbr.rel (0) target = $region5
    $region4: #{tpu_custom_call.1} parent=1 // pred_region
      %31 = vsyncadd [#allocation3], 0
      %s33 = sshll.u32 %s0, 4
      %s34 = int_to_ptr.hbm [resolvable:$true] %s33
      %s35 = sshll.u32 [#allocation2], 4
      %s36 = int_to_ptr.vmem [resolvable:$true] %s35
      %38 = dma.hbm_to_vmem [thread:$0]  %s34, 128, %s36, [#allocation3]
    $region5: #{tpu_custom_call.1} parent=1 // pred_fallthru
      _
    // Predicated region
    $region6: #{tpu_custom_call.1} parent=1 // pred_check
      _
    $region7: #{tpu_custom_call.1} parent=1 // pred_check_branch
      %40 = sbr.rel (0) target = $region9
    $region8: #{tpu_custom_call.1} parent=1 // pred_region
      %42 = vsyncadd [#allocation6], 0
      %s44 = sshll.u32 %s1, 4
      %s45 = int_to_ptr.hbm [resolvable:$true] %s44
      %s46 = sshll.u32 [#allocation5], 4
      %s47 = int_to_ptr.vmem [resolvable:$true] %s46
      %49 = dma.hbm_to_vmem [thread:$0]  %s45, 128, %s47, [#allocation6]
    $region9: #{tpu_custom_call.1} parent=1 // pred_fallthru
      _
    // Predicated region
    $region10: #{tpu_custom_call.1} parent=1 // pred_check
      _
    $region11: #{tpu_custom_call.1} parent=1 // pred_check_branch
      %51 = sbr.rel (0) target = $region13
    $region12: #{tpu_custom_call.1} parent=1 // pred_region
      %53 = vsyncadd [#allocation6], 0
      %s54 = sshll.u32 %s2, 4
      %s55 = int_to_ptr.hbm [resolvable:$true] %s54
      %s56 = sshll.u32 [#allocation7], 4
      %s57 = int_to_ptr.vmem [resolvable:$true] %s56
      %62 = dma.hbm_to_vmem [thread:$0]  %s55, 1024, %s57, [#allocation6], 128, 128, 8
    $region13: #{tpu_custom_call.1} parent=1 // pred_fallthru
      _
    // Predicated region
    $region14: #{tpu_custom_call.1} parent=1 // pred_check
      _
    $region15: #{tpu_custom_call.1} parent=1 // pred_check_branch
      %64 = sbr.rel (0) target = $region17
    $region16: #{tpu_custom_call.1} parent=1 // pred_region
      %66 = vsyncadd [#allocation9], 0
      %s68 = sshll.u32 %s3, 4
      %s69 = int_to_ptr.hbm [resolvable:$true] %s68
      %s70 = sshll.u32 [#allocation8], 4
      %s71 = int_to_ptr.vmem [resolvable:$true] %s70
      %73 = dma.hbm_to_vmem [thread:$0]  %s69, 128, %s71, [#allocation9]
    $region17: #{tpu_custom_call.1} parent=1 // pred_fallthru
      _
    // Predicated region
    $region18: #{tpu_custom_call.1} parent=1 // pred_check
      _
    $region19: #{tpu_custom_call.1} parent=1 // pred_check_branch
      %75 = sbr.rel (0) target = $region21
    $region20: #{tpu_custom_call.1} parent=1 // pred_region
      %77 = vsyncadd [#allocation9], 0
      %s78 = sshll.u32 %s4, 4
      %s79 = int_to_ptr.hbm [resolvable:$true] %s78
      %s80 = sshll.u32 [#allocation10], 4
      %s81 = int_to_ptr.vmem [resolvable:$true] %s80
      %86 = dma.hbm_to_vmem [thread:$0]  %s79, 768, %s81, [#allocation9], 128, 128, 8
    $region21: #{tpu_custom_call.1} parent=1 // pred_fallthru
      _
    // Predicated region
    $region22: #{tpu_custom_call.1} parent=1 // pred_check
      _
    $region23: #{tpu_custom_call.1} parent=1 // pred_check_branch
      %88 = sbr.rel (0) target = $region25
    $region24: #{tpu_custom_call.1} parent=1 // pred_region
      _
    $region25: #{tpu_custom_call.1} parent=1 // pred_fallthru
      _
    // Predicated region
    $region26: #{tpu_custom_call.1} parent=1 // pred_check
      _
    $region27: #{tpu_custom_call.1} parent=1 // pred_check_branch
      %90 = sbr.rel (0) target = $region29
    $region28: #{tpu_custom_call.1} parent=1 // pred_region
      %92 = vsyncadd [#allocation12], 0
      %s93 = sshll.u32 %s6, 4
      %s94 = int_to_ptr.hbm [resolvable:$true] %s93
      %s95 = sshll.u32 [#allocation11], 4
      %s96 = int_to_ptr.vmem [resolvable:$true] %s95
      %101 = dma.hbm_to_vmem [thread:$0]  %s94, 512, %s96, [#allocation12], 128, 128, 8
    $region29: #{tpu_custom_call.1} parent=1 // pred_fallthru
      _
    // Predicated region
    $region30: #{tpu_custom_call.1} parent=1 // pred_check
      _
    $region31: #{tpu_custom_call.1} parent=1 // pred_check_branch
      %103 = sbr.rel (0) target = $region33
    $region32: #{tpu_custom_call.1} parent=1 // pred_region
      %105 = vsyncadd [#allocation12], 0
      %s106 = sshll.u32 %s7, 4
      %s107 = int_to_ptr.hbm [resolvable:$true] %s106
      %s108 = sshll.u32 [#allocation13], 4
      %s109 = int_to_ptr.vmem [resolvable:$true] %s108
      %114 = dma.hbm_to_vmem [thread:$0]  %s107, 512, %s109, [#allocation12], 128, 128, 8
    $region33: #{tpu_custom_call.1} parent=1 // pred_fallthru
      _
    // Predicated region
    $region34: #{tpu_custom_call.1} parent=1 // pred_check
      _
    $region35: #{tpu_custom_call.1} parent=1 // pred_check_branch
      %116 = sbr.rel (0) target = $region37
    $region36: #{tpu_custom_call.1} parent=1 // pred_region
      %118 = vsyncadd [#allocation15], 0
      %s119 = sshll.u32 %s8, 4
      %s120 = int_to_ptr.hbm [resolvable:$true] %s119
      %s121 = sshll.u32 [#allocation14], 4
      %s122 = int_to_ptr.vmem [resolvable:$true] %s121
      %127 = dma.hbm_to_vmem [thread:$0]  %s120, 512, %s122, [#allocation15], 128, 128, 8
    $region37: #{tpu_custom_call.1} parent=1 // pred_fallthru
      _
    // Predicated region
    $region38: #{tpu_custom_call.1} parent=1 // pred_check
      _
    $region39: #{tpu_custom_call.1} parent=1 // pred_check_branch
      %129 = sbr.rel (0) target = $region41
    $region40: #{tpu_custom_call.1} parent=1 // pred_region
      %131 = vsyncadd [#allocation15], 0
      %s132 = sshll.u32 %s9, 4
      %s133 = int_to_ptr.hbm [resolvable:$true] %s132
      %s134 = sshll.u32 [#allocation16], 4
      %s135 = int_to_ptr.vmem [resolvable:$true] %s134
      %140 = dma.hbm_to_vmem [thread:$0]  %s133, 512, %s135, [#allocation15], 128, 128, 8
    $region41: #{tpu_custom_call.1} parent=1 // pred_fallthru
      _
    // Predicated region
    $region42: #{tpu_custom_call.1} parent=1 // pred_check
      _
    $region43: #{tpu_custom_call.1} parent=1 // pred_check_branch
      %142 = sbr.rel (0) target = $region45
    $region44: #{tpu_custom_call.1} parent=1 // pred_region
      _
    $region45: #{tpu_custom_call.1} parent=1 // pred_fallthru
      _
    // Predicated region
    $region46: #{tpu_custom_call.1} parent=1 // pred_check
      _
    $region47: #{tpu_custom_call.1} parent=1 // pred_check_branch
      %144 = sbr.rel (0) target = $region49
    $region48: #{tpu_custom_call.1} parent=1 // pred_region
      %146 = dma.done [#allocation3], 128
    $region49: #{tpu_custom_call.1} parent=1 // pred_fallthru
      _
    // Predicated region
    $region50: #{tpu_custom_call.1} parent=1 // pred_check
      _
    $region51: #{tpu_custom_call.1} parent=1 // pred_check_branch
      %148 = sbr.rel (0) target = $region53
    $region52: #{tpu_custom_call.1} parent=1 // pred_region
      %150 = dma.done [#allocation6], 128
    $region53: #{tpu_custom_call.1} parent=1 // pred_fallthru
      _
    // Predicated region
    $region54: #{tpu_custom_call.1} parent=1 // pred_check
      _
    $region55: #{tpu_custom_call.1} parent=1 // pred_check_branch
      %152 = sbr.rel (0) target = $region57
    $region56: #{tpu_custom_call.1} parent=1 // pred_region
      %154 = dma.done [#allocation6], 1024
    $region57: #{tpu_custom_call.1} parent=1 // pred_fallthru
      _
    // Predicated region
    $region58: #{tpu_custom_call.1} parent=1 // pred_check
      _
    $region59: #{tpu_custom_call.1} parent=1 // pred_check_branch
      %156 = sbr.rel (0) target = $region61
    $region60: #{tpu_custom_call.1} parent=1 // pred_region
      %158 = dma.done [#allocation9], 128
    $region61: #{tpu_custom_call.1} parent=1 // pred_fallthru
      _
    // Predicated region
    $region62: #{tpu_custom_call.1} parent=1 // pred_check
      _
    $region63: #{tpu_custom_call.1} parent=1 // pred_check_branch
      %160 = sbr.rel (0) target = $region65
    $region64: #{tpu_custom_call.1} parent=1 // pred_region
      %162 = dma.done [#allocation9], 768
    $region65: #{tpu_custom_call.1} parent=1 // pred_fallthru
      _
    // Predicated region
    $region66: #{tpu_custom_call.1} parent=1 // pred_check
      _
    $region67: #{tpu_custom_call.1} parent=1 // pred_check_branch
      %164 = sbr.rel (0) target = $region69
    $region68: #{tpu_custom_call.1} parent=1 // pred_region
      %166 = dma.done [#allocation12], 512
    $region69: #{tpu_custom_call.1} parent=1 // pred_fallthru
      _
    // Predicated region
    $region70: #{tpu_custom_call.1} parent=1 // pred_check
      _
    $region71: #{tpu_custom_call.1} parent=1 // pred_check_branch
      %168 = sbr.rel (0) target = $region73
    $region72: #{tpu_custom_call.1} parent=1 // pred_region
      %170 = dma.done [#allocation12], 512
    $region73: #{tpu_custom_call.1} parent=1 // pred_fallthru
      _
    // Predicated region
    $region74: #{tpu_custom_call.1} parent=1 // pred_check
      _
    $region75: #{tpu_custom_call.1} parent=1 // pred_check_branch
      %172 = sbr.rel (0) target = $region77
    $region76: #{tpu_custom_call.1} parent=1 // pred_region
      %174 = dma.done [#allocation15], 512
    $region77: #{tpu_custom_call.1} parent=1 // pred_fallthru
      _
    // Predicated region
    $region78: #{tpu_custom_call.1} parent=1 // pred_check
      _
    $region79: #{tpu_custom_call.1} parent=1 // pred_check_branch
      %176 = sbr.rel (0) target = $region81
    $region80: #{tpu_custom_call.1} parent=1 // pred_region
      %178 = dma.done [#allocation15], 512
    $region81: #{tpu_custom_call.1} parent=1 // pred_fallthru
      _
    %v179 = vld [vmem:[#allocation2] sm:$0xff]
    %v180 = vld [vmem:[#allocation5] sm:$0xff]
    %v181 = vld [vmem:[#allocation7] sm:$0xff]
    %v182 = vld [vmem:[#allocation7 + $0x8] sm:$0xff]
    %v183 = vld [vmem:[#allocation7 + $0x10] sm:$0xff]
    %v184 = vld [vmem:[#allocation7 + $0x18] sm:$0xff]
    %v185 = vld [vmem:[#allocation7 + $0x20] sm:$0xff]
    %v186 = vld [vmem:[#allocation7 + $0x28] sm:$0xff]
    %v187 = vld [vmem:[#allocation7 + $0x30] sm:$0xff]
    %v188 = vld [vmem:[#allocation7 + $0x38] sm:$0xff]
    %v189 = vld [vmem:[#allocation8] sm:$0xff]
    %v190 = vld [vmem:[#allocation10] sm:$0xff]
    %v191 = vld [vmem:[#allocation10 + $0x8] sm:$0xff]
    %v192 = vld [vmem:[#allocation10 + $0x10] sm:$0xff]
    %v193 = vld [vmem:[#allocation10 + $0x18] sm:$0xff]
    %v194 = vld [vmem:[#allocation10 + $0x20] sm:$0xff]
    %v195 = vld [vmem:[#allocation10 + $0x28] sm:$0xff]
    %v196 = vld [vmem:[%s5] sm:$0x1]
    %v198 = vperm.slane %v196, 0
    %vm200 = vcmask 392192
    %v202 = vsel %vm200, %v179, 0
    %204 = vmatpush.msra.mxu0 0.0
    %205 = vmatpush.msra.mxu0 0.0
    %206 = vmatpush.msra.mxu0 0.0
    %207 = vmatpush.msra.mxu0 0.0
    %208 = vmatpush.msra.mxu0 0.0
    %209 = vmatpush.msra.mxu0 0.0
    %210 = vmatpush.msra.mxu0 0.0
    %211 = vmatpush.msra.mxu0 0.0
    %212 = vmatpush.msra.mxu0 0.0
    %213 = vmatpush.msra.mxu0 0.0
    %214 = vmatpush.msra.mxu0 %v195
    %215 = vmatpush.msra.mxu0 %v194
    %216 = vmatpush.msra.mxu0 %v193
    %217 = vmatpush.msra.mxu0 %v192
    %218 = vmatpush.msra.mxu0 %v191
    %219 = vmatpush.msra.mxu0 %v190
    %220 = vmatmul.f32.gmra.mxu0 %v202
    %v221 = vpop.f32.mrf.mxu0
    %v222 = vadd.f32 %v198, %v221
    %223 = vdwg.mxu0
    %v224 = vxor.u32 %v222, 2147483648
    %v225 = vmul.f32 %v224, 1.442695
    %v226 = vpow.pop %v225
    %v227 = vadd.f32 %v226, 1.0
    %v228 = vrcp.pop %v227
    %v229 = vmul.f32 %v227, %v228
    %v230 = vsub.f32 1.0, %v229
    %v231 = vmul.f32 %v228, %v230
    %v232 = vadd.f32 %v228, %v231
    %vm233 = vweird.f32 %v227
    %vm234 = vweird.f32 %v228
    %vm235 = vmor %vm233, %vm234
    %v236 = vsel %vm235, %v228, %v232
    %v237 = vand.u32 2147483647, %v227
    %vm238 = vcmp.eq.f32.partialorder %v237, 8.507059e+37
    %v239 = vand.u32 %v227, 2147483648
    %v240 = vor.u32 1.1754944e-38, %v239
    %v241 = vsel %vm238, %v240, %v236
    %v242 = vmul.f32 1.0, %v241
    %v243 = vtanh.pop %v222
    %245 = vrot.lane.b32.xlu0 %v180, 32
    %v246 = vpop.permute.xlu0 %245
    %v248 = vmul.f32 %v242, %v246
    %250 = vrot.lane.b32.xlu0 %v243, 64
    %v251 = vpop.permute.xlu0 %250
    %v253 = vmul.f32 %v242, %v251
    %255 = vrot.lane.b32.xlu0 %v253, 32
    %v256 = vpop.permute.xlu0 %255
    %v258 = vadd.f32 %v248, %v256
    %v259 = vtanh.pop %v258
    %261 = vrot.lane.b32.xlu0 %v259, 64
    %v262 = vpop.permute.xlu0 %261
    %v264 = vmul.f32 %v242, %v262
    %v265 = vld [vmem:[#allocation11] sm:$0xff]
    %v266 = vld [vmem:[#allocation11 + $0x8] sm:$0xff]
    %v267 = vld [vmem:[#allocation11 + $0x10] sm:$0xff]
    %v268 = vld [vmem:[#allocation11 + $0x18] sm:$0xff]
    %270 = vrot.lane.b32.xlu0 %v264, 32
    %v271 = vpop.permute.xlu0 %270
    %vm272 = vcmask 261120
    %v273 = vsel %vm272, %v271, 0
    %275 = vmatpush.msra.mxu0 0.0
    %276 = vmatpush.msra.mxu0 0.0
    %277 = vmatpush.msra.mxu0 0.0
    %278 = vmatpush.msra.mxu0 0.0
    %279 = vmatpush.msra.mxu0 0.0
    %280 = vmatpush.msra.mxu0 0.0
    %281 = vmatpush.msra.mxu0 0.0
    %282 = vmatpush.msra.mxu0 0.0
    %283 = vmatpush.msra.mxu0 0.0
    %284 = vmatpush.msra.mxu0 0.0
    %285 = vmatpush.msra.mxu0 0.0
    %286 = vmatpush.msra.mxu0 0.0
    %287 = vmatpush.msra.mxu0 %v268
    %288 = vmatpush.msra.mxu0 %v267
    %289 = vmatpush.msra.mxu0 %v266
    %290 = vmatpush.msra.mxu0 %v265
    %291 = vmatmul.f32.gmra.mxu0 %v273
    %v292 = vpop.f32.mrf.mxu0
    %v293 = vadd.f32 0.0, %v292
    %294 = vdwg.mxu0
    %v296 = vrot.slane %v293, 1
    %v297 = vrot.slane %v293, 2
    %v298 = vrot.slane %v293, 3
    %v299 = vrot.slane %v293, 4
    %v300 = vrot.slane %v293, 5
    %v301 = vrot.slane %v293, 6
    %v302 = vrot.slane %v293, 7
    %v303 = vperm.slane %v293, 0
    %v304 = vperm.slane %v296, 0
    %v305 = vperm.slane %v297, 0
    %v306 = vperm.slane %v298, 0
    %v307 = vperm.slane %v299, 0
    %v308 = vperm.slane %v300, 0
    %v309 = vperm.slane %v301, 0
    %v310 = vperm.slane %v302, 0
    %v319 = vmul.f32 %v181, %v303
    %v320 = vmul.f32 %v182, %v304
    %v321 = vmul.f32 %v183, %v305
    %v322 = vmul.f32 %v184, %v306
    %v323 = vmul.f32 %v185, %v307
    %v324 = vmul.f32 %v186, %v308
    %v325 = vmul.f32 %v187, %v309
    %v326 = vmul.f32 %v188, %v310
    %v327 = vsel %vm272, %v319, 0.0
    %328 = vadd.xlane.f32.xlu0 %v327
    %v329 = vpop.xlane.xlu0 %328
    %v330 = vsel %vm272, %v320, 0.0
    %331 = vadd.xlane.f32.xlu0 %v330
    %v332 = vpop.xlane.xlu0 %331
    %v333 = vsel %vm272, %v321, 0.0
    %334 = vadd.xlane.f32.xlu0 %v333
    %v335 = vpop.xlane.xlu0 %334
    %v336 = vsel %vm272, %v322, 0.0
    %337 = vadd.xlane.f32.xlu0 %v336
    %v338 = vpop.xlane.xlu0 %337
    %v339 = vsel %vm272, %v323, 0.0
    %340 = vadd.xlane.f32.xlu0 %v339
    %v341 = vpop.xlane.xlu0 %340
    %v342 = vsel %vm272, %v324, 0.0
    %343 = vadd.xlane.f32.xlu0 %v342
    %v344 = vpop.xlane.xlu0 %343
    %v345 = vsel %vm272, %v325, 0.0
    %346 = vadd.xlane.f32.xlu0 %v345
    %v347 = vpop.xlane.xlu0 %346
    %v348 = vsel %vm272, %v326, 0.0
    %349 = vadd.xlane.f32.xlu0 %v348
    %v350 = vpop.xlane.xlu0 %349
    %vm351 = vcmp.gt.f32.partialorder %v189, 0.5
    %v360 = vlaneseq
    %v361 = vand.u32 %v360, 127
    %v362 = vperm.slane %v329, %v361
    %v363 = vperm.slane %v332, %v361
    %v364 = vperm.slane %v335, %v361
    %v365 = vperm.slane %v338, %v361
    %v366 = vperm.slane %v341, %v361
    %v367 = vperm.slane %v344, %v361
    %v368 = vperm.slane %v347, %v361
    %v369 = vperm.slane %v350, %v361
    %vm370 = vcmask 1041409
    %v371 = vsel %vm370, %v363, %v362
    %vm372 = vcmask 1042434
    %v373 = vsel %vm372, %v364, %v371
    %vm374 = vcmask 1043459
    %v375 = vsel %vm374, %v365, %v373
    %vm376 = vcmask 1044484
    %v377 = vsel %vm376, %v366, %v375
    %vm378 = vcmask 1045509
    %v379 = vsel %vm378, %v367, %v377
    %vm380 = vcmask 1046534
    %v381 = vsel %vm380, %v368, %v379
    %vm382 = vcmask 1047559
    %v383 = vsel %vm382, %v369, %v381
    %v385 = vsel %vm351, -inf, %v383
    %vm386 = vcmask 64512
    %v387 = vsel %vm386, %v385, -inf
    %388 = vmax.xlane.f32.xlu0 %v387
    %v389 = vpop.xlane.xlu0 %388
    %v390 = vsub.f32 %v385, %v389
    %v391 = vmul.f32 %v390, 1.442695
    %v392 = vpow.pop %v391
    %v393 = vsel %vm386, %v392, 0.0
    %394 = vadd.xlane.f32.xlu0 %v393
    %v395 = vpop.xlane.xlu0 %394
    %v396 = vrcp.pop %v395
    %v397 = vmul.f32 %v395, %v396
    %v398 = vsub.f32 1.0, %v397
    %v399 = vmul.f32 %v396, %v398
    %v400 = vadd.f32 %v396, %v399
    %vm401 = vweird.f32 %v395
    %vm402 = vweird.f32 %v396
    %vm403 = vmor %vm401, %vm402
    %v404 = vsel %vm403, %v396, %v400
    %v405 = vand.u32 2147483647, %v395
    %vm406 = vcmp.eq.f32.partialorder %v405, 8.507059e+37
    %v407 = vand.u32 %v395, 2147483648
    %v408 = vor.u32 1.1754944e-38, %v407
    %v409 = vsel %vm406, %v408, %v404
    %v410 = vmul.f32 %v392, %v409
    %v411 = vperm.slane %v410, 0
    %v412 = vlaneseq
    %v413 = vshrl.u32 %v412, 7
    %415 = vset.pattern.permute.xlu0 %v413
    %416 = vperm.xlu0 %415, %v411
    %v417 = vpop.permute.xlu0 %416
    %v418 = vperm.slane %v410, 1
    %v419 = vlaneseq
    %v420 = vshrl.u32 %v419, 7
    %422 = vset.pattern.permute.xlu0 %v420
    %423 = vperm.xlu0 %422, %v418
    %v424 = vpop.permute.xlu0 %423
    %v425 = vperm.slane %v410, 2
    %v426 = vlaneseq
    %v427 = vshrl.u32 %v426, 7
    %429 = vset.pattern.permute.xlu0 %v427
    %430 = vperm.xlu0 %429, %v425
    %v431 = vpop.permute.xlu0 %430
    %v432 = vperm.slane %v410, 3
    %v433 = vlaneseq
    %v434 = vshrl.u32 %v433, 7
    %436 = vset.pattern.permute.xlu0 %v434
    %437 = vperm.xlu0 %436, %v432
    %v438 = vpop.permute.xlu0 %437
    %v439 = vperm.slane %v410, 4
    %v440 = vlaneseq
    %v441 = vshrl.u32 %v440, 7
    %443 = vset.pattern.permute.xlu0 %v441
    %444 = vperm.xlu0 %443, %v439
    %v445 = vpop.permute.xlu0 %444
    %v446 = vperm.slane %v410, 5
    %v447 = vlaneseq
    %v448 = vshrl.u32 %v447, 7
    %450 = vset.pattern.permute.xlu0 %v448
    %451 = vperm.xlu0 %450, %v446
    %v452 = vpop.permute.xlu0 %451
    %v453 = vperm.slane %v410, 6
    %v454 = vlaneseq
    %v455 = vshrl.u32 %v454, 7
    %457 = vset.pattern.permute.xlu0 %v455
    %458 = vperm.xlu0 %457, %v453
    %v459 = vpop.permute.xlu0 %458
    %v460 = vperm.slane %v410, 7
    %v461 = vlaneseq
    %v462 = vshrl.u32 %v461, 7
    %464 = vset.pattern.permute.xlu0 %v462
    %465 = vperm.xlu0 %464, %v460
    %v466 = vpop.permute.xlu0 %465
    %v467 = vmul.f32 %v417, %v181
    %v468 = vmul.f32 %v424, %v182
    %v469 = vmul.f32 %v431, %v183
    %v470 = vmul.f32 %v438, %v184
    %v471 = vmul.f32 %v445, %v185
    %v472 = vmul.f32 %v452, %v186
    %v473 = vmul.f32 %v459, %v187
    %v474 = vmul.f32 %v466, %v188
    %v475 = vsel %vm272, %v467, 0.0
    %v476 = vrot.slane %v475, 4
    %v477 = vadd.f32 %v475, %v476
    %v478 = vrot.slane %v477, 2
    %v479 = vadd.f32 %v477, %v478
    %v480 = vrot.slane %v479, 1
    %v481 = vadd.f32 %v479, %v480
    %v482 = vsel %vm272, %v468, 0.0
    %v483 = vrot.slane %v482, 4
    %v484 = vadd.f32 %v482, %v483
    %v485 = vrot.slane %v484, 2
    %v486 = vadd.f32 %v484, %v485
    %v487 = vrot.slane %v486, 1
    %v488 = vadd.f32 %v486, %v487
    %v489 = vsel %vm272, %v469, 0.0
    %v490 = vrot.slane %v489, 4
    %v491 = vadd.f32 %v489, %v490
    %v492 = vrot.slane %v491, 2
    %v493 = vadd.f32 %v491, %v492
    %v494 = vrot.slane %v493, 1
    %v495 = vadd.f32 %v493, %v494
    %v496 = vsel %vm272, %v470, 0.0
    %v497 = vrot.slane %v496, 4
    %v498 = vadd.f32 %v496, %v497
    %v499 = vrot.slane %v498, 2
    %v500 = vadd.f32 %v498, %v499
    %v501 = vrot.slane %v500, 1
    %v502 = vadd.f32 %v500, %v501
    %v503 = vsel %vm272, %v471, 0.0
    %v504 = vrot.slane %v503, 4
    %v505 = vadd.f32 %v503, %v504
    %v506 = vrot.slane %v505, 2
    %v507 = vadd.f32 %v505, %v506
    %v508 = vrot.slane %v507, 1
    %v509 = vadd.f32 %v507, %v508
    %v510 = vsel %vm272, %v472, 0.0
    %v511 = vrot.slane %v510, 4
    %v512 = vadd.f32 %v510, %v511
    %v513 = vrot.slane %v512, 2
    %v514 = vadd.f32 %v512, %v513
    %v515 = vrot.slane %v514, 1
    %v516 = vadd.f32 %v514, %v515
    %v517 = vsel %vm272, %v473, 0.0
    %v518 = vrot.slane %v517, 4
    %v519 = vadd.f32 %v517, %v518
    %v520 = vrot.slane %v519, 2
    %v521 = vadd.f32 %v519, %v520
    %v522 = vrot.slane %v521, 1
    %v523 = vadd.f32 %v521, %v522
    %v524 = vsel %vm272, %v474, 0.0
    %v525 = vrot.slane %v524, 4
    %v526 = vadd.f32 %v524, %v525
    %v527 = vrot.slane %v526, 2
    %v528 = vadd.f32 %v526, %v527
    %v529 = vrot.slane %v528, 1
    %v530 = vadd.f32 %v528, %v529
    %v531 = vld [vmem:[#allocation13] sm:$0xff]
    %v532 = vld [vmem:[#allocation13 + $0x8] sm:$0xff]
    %v533 = vld [vmem:[#allocation13 + $0x10] sm:$0xff]
    %v534 = vld [vmem:[#allocation13 + $0x18] sm:$0xff]
    %v535 = vld [vmem:[#allocation14] sm:$0xff]
    %v536 = vld [vmem:[#allocation14 + $0x8] sm:$0xff]
    %v537 = vld [vmem:[#allocation14 + $0x10] sm:$0xff]
    %v538 = vld [vmem:[#allocation14 + $0x18] sm:$0xff]
    %539 = vmatpush.msra.mxu0 0.0
    %540 = vmatpush.msra.mxu0 0.0
    %541 = vmatpush.msra.mxu0 0.0
    %542 = vmatpush.msra.mxu0 0.0
    %543 = vmatpush.msra.mxu0 0.0
    %544 = vmatpush.msra.mxu0 0.0
    %545 = vmatpush.msra.mxu0 0.0
    %546 = vmatpush.msra.mxu0 0.0
    %547 = vmatpush.msra.mxu0 0.0
    %548 = vmatpush.msra.mxu0 0.0
    %549 = vmatpush.msra.mxu0 0.0
    %550 = vmatpush.msra.mxu0 0.0
    %551 = vmatpush.msra.mxu0 %v538
    %552 = vmatpush.msra.mxu0 %v537
    %553 = vmatpush.msra.mxu0 %v536
    %554 = vmatpush.msra.mxu0 %v535
    %555 = vmatmul.f32.gmra.mxu0 %v273
    %v556 = vpop.f32.mrf.mxu0
    %v557 = vadd.f32 0.0, %v556
    %558 = vdwg.mxu0
    %v567 = vsel %vm370, %v488, %v481
    %v568 = vsel %vm372, %v495, %v567
    %v569 = vsel %vm374, %v502, %v568
    %v570 = vsel %vm376, %v509, %v569
    %v571 = vsel %vm378, %v516, %v570
    %v572 = vsel %vm380, %v523, %v571
    %v573 = vsel %vm382, %v530, %v572
    %v574 = vsel %vm272, %v573, 0
    %576 = vmatpush.msra.mxu0 0.0
    %577 = vmatpush.msra.mxu0 0.0
    %578 = vmatpush.msra.mxu0 0.0
    %579 = vmatpush.msra.mxu0 0.0
    %580 = vmatpush.msra.mxu0 0.0
    %581 = vmatpush.msra.mxu0 0.0
    %582 = vmatpush.msra.mxu0 0.0
    %583 = vmatpush.msra.mxu0 0.0
    %584 = vmatpush.msra.mxu0 0.0
    %585 = vmatpush.msra.mxu0 0.0
    %586 = vmatpush.msra.mxu0 0.0
    %587 = vmatpush.msra.mxu0 0.0
    %588 = vmatpush.msra.mxu0 %v534
    %589 = vmatpush.msra.mxu0 %v533
    %590 = vmatpush.msra.mxu0 %v532
    %591 = vmatpush.msra.mxu0 %v531
    %592 = vmatmul.f32.gmra.mxu0 %v574
    %v593 = vpop.f32.mrf.mxu0
    %v594 = vadd.f32 %v557, %v593
    %595 = vdwg.mxu0
    %v596 = vtanh.pop %v594
    %v597 = vld [vmem:[#allocation16] sm:$0xff]
    %v598 = vld [vmem:[#allocation16 + $0x8] sm:$0xff]
    %v599 = vld [vmem:[#allocation16 + $0x10] sm:$0xff]
    %v600 = vld [vmem:[#allocation16 + $0x18] sm:$0xff]
    %v601 = vld [vmem:[%s10] sm:$0x1]
    %v603 = vperm.slane %v601, 0
    %v606 = vsel %vm272, %v596, 0
    %608 = vmatpush.msra.mxu0 0.0
    %609 = vmatpush.msra.mxu0 0.0
    %610 = vmatpush.msra.mxu0 0.0
    %611 = vmatpush.msra.mxu0 0.0
    %612 = vmatpush.msra.mxu0 0.0
    %613 = vmatpush.msra.mxu0 0.0
    %614 = vmatpush.msra.mxu0 0.0
    %615 = vmatpush.msra.mxu0 0.0
    %616 = vmatpush.msra.mxu0 0.0
    %617 = vmatpush.msra.mxu0 0.0
    %618 = vmatpush.msra.mxu0 0.0
    %619 = vmatpush.msra.mxu0 0.0
    %620 = vmatpush.msra.mxu0 %v600
    %621 = vmatpush.msra.mxu0 %v599
    %622 = vmatpush.msra.mxu0 %v598
    %623 = vmatpush.msra.mxu0 %v597
    %624 = vmatmul.f32.gmra.mxu0 %v606
    %v625 = vpop.f32.mrf.mxu0
    %v626 = vadd.f32 %v603, %v625
    %627 = vdwg.mxu0
    %629 = vst.msk [vmem:[#allocation17] sm:$0xff] %vm272, %v271
    %631 = vrot.lane.b32.xlu0 %v258, 96
    %v632 = vpop.permute.xlu0 %631
    %634 = vst.msk [vmem:[#allocation18] sm:$0xff] %vm272, %v632
    %635 = vst.msk [vmem:[#allocation20] sm:$0xff] %vm386, %v410
    %vm636 = vcmask 523264
    %637 = vst.msk [vmem:[#allocation21] sm:$0xff] %vm636, %v626
    // Predicated region
    $region82: #{tpu_custom_call.1} parent=1 // pred_check
      _
    $region83: #{tpu_custom_call.1} parent=1 // pred_check_branch
      %639 = sbr.rel (0) target = $region85
    $region84: #{tpu_custom_call.1} parent=1 // pred_region
      %641 = vsyncadd [#allocation4], 0
      %s643 = sshll.u32 [#allocation17], 4
      %s644 = int_to_ptr.vmem [resolvable:$true] %s643
      %s645 = sshll.u32 %s11, 4
      %s646 = int_to_ptr.hbm [resolvable:$true] %s645
      %648 = dma.vmem_to_hbm [thread:$0]  %s644, 128, %s646, [#allocation4]
    $region85: #{tpu_custom_call.1} parent=1 // pred_fallthru
      _
    // Predicated region
    $region86: #{tpu_custom_call.1} parent=1 // pred_check
      _
    $region87: #{tpu_custom_call.1} parent=1 // pred_check_branch
      %650 = sbr.rel (0) target = $region89
    $region88: #{tpu_custom_call.1} parent=1 // pred_region
      %652 = vsyncadd [#allocation19], 0
      %s654 = sshll.u32 [#allocation18], 4
      %s655 = int_to_ptr.vmem [resolvable:$true] %s654
      %s656 = sshll.u32 %s12, 4
      %s657 = int_to_ptr.hbm [resolvable:$true] %s656
      %659 = dma.vmem_to_hbm [thread:$0]  %s655, 128, %s657, [#allocation19]
    $region89: #{tpu_custom_call.1} parent=1 // pred_fallthru
      _
    // Predicated region
    $region90: #{tpu_custom_call.1} parent=1 // pred_check
      _
    $region91: #{tpu_custom_call.1} parent=1 // pred_check_branch
      %661 = sbr.rel (0) target = $region93
    $region92: #{tpu_custom_call.1} parent=1 // pred_region
      %663 = vsyncadd [#allocation19], 0
      %s665 = sshll.u32 [#allocation20], 4
      %s666 = int_to_ptr.vmem [resolvable:$true] %s665
      %s667 = sshll.u32 %s13, 4
      %s668 = int_to_ptr.hbm [resolvable:$true] %s667
      %670 = dma.vmem_to_hbm [thread:$0]  %s666, 128, %s668, [#allocation19]
    $region93: #{tpu_custom_call.1} parent=1 // pred_fallthru
      _
    // Predicated region
    $region94: #{tpu_custom_call.1} parent=1 // pred_check
      _
    $region95: #{tpu_custom_call.1} parent=1 // pred_check_branch
      %672 = sbr.rel (0) target = $region97
    $region96: #{tpu_custom_call.1} parent=1 // pred_region
      %674 = vsyncadd [#allocation22], 0
      %s676 = sshll.u32 [#allocation21], 4
      %s677 = int_to_ptr.vmem [resolvable:$true] %s676
      %s678 = sshll.u32 %s14, 4
      %s679 = int_to_ptr.hbm [resolvable:$true] %s678
      %681 = dma.vmem_to_hbm [thread:$0]  %s677, 128, %s679, [#allocation22]
    $region97: #{tpu_custom_call.1} parent=1 // pred_fallthru
      _
    // Predicated region
    $region98: #{tpu_custom_call.1} parent=1 // pred_check
      _
    $region99: #{tpu_custom_call.1} parent=1 // pred_check_branch
      %683 = sbr.rel (0) target = $region101
    $region100: #{tpu_custom_call.1} parent=1 // pred_region
      %685 = dma.done [#allocation4], 128
    $region101: #{tpu_custom_call.1} parent=1 // pred_fallthru
      _
    // Predicated region
    $region102: #{tpu_custom_call.1} parent=1 // pred_check
      _
    $region103: #{tpu_custom_call.1} parent=1 // pred_check_branch
      %687 = sbr.rel (0) target = $region105
    $region104: #{tpu_custom_call.1} parent=1 // pred_region
      %689 = dma.done [#allocation19], 128
    $region105: #{tpu_custom_call.1} parent=1 // pred_fallthru
      _
    // Predicated region
    $region106: #{tpu_custom_call.1} parent=1 // pred_check
      _
    $region107: #{tpu_custom_call.1} parent=1 // pred_check_branch
      %691 = sbr.rel (0) target = $region109
    $region108: #{tpu_custom_call.1} parent=1 // pred_region
      %693 = dma.done [#allocation19], 128
    $region109: #{tpu_custom_call.1} parent=1 // pred_fallthru
      _
    // Predicated region
    $region110: #{tpu_custom_call.1} parent=1 // pred_check
      _
    $region111: #{tpu_custom_call.1} parent=1 // pred_check_branch
      %695 = sbr.rel (0) target = $region113
    $region112: #{tpu_custom_call.1} parent=1 // pred_region
      %697 = dma.done [#allocation22], 128
    $region113: #{tpu_custom_call.1} parent=1 // pred_fallthru
      _
    %698 = vsyncpa [#allocation3], 1
    %699 = vsyncpa [#allocation6], 1
    %700 = vsyncpa [#allocation9], 1
    %701 = vsyncpa [#allocation12], 1
    %702 = vsyncpa [#allocation15], 1
    %703 = vsyncpa [#allocation4], 1
    %704 = vsyncpa [#allocation19], 1
    %705 = vsyncpa [#allocation22], 1

// kernel: tpu_custom_call.1
$region0: #{tpu_custom_call.1}
  #allocation0 [shape = 'u32[]', space=smem, size = 0x4, offset = 0x4, fixed_abs, tag = 'smem constant byte address 0x4 - core index']
  #allocation1 [shape = 'u32[72,128]{1,0:T(1,128)}', space=vmem, size = 0x9000, scoped, tag = 'internal scratch']
  %s0 = inlined_call_operand.hbm [shape: f32[8,48], index: 0, kind: input, shape index: {}]
  %s1 = inlined_call_operand.hbm [shape: f32[8,32], index: 1, kind: input, shape index: {}]
  %s2 = inlined_call_operand.hbm [shape: f32[8,8,32], index: 2, kind: input, shape index: {}]
  %s3 = inlined_call_operand.hbm [shape: f32[8,8], index: 3, kind: input, shape index: {}]
  %s4 = inlined_call_operand.hbm [shape: f32[48,128], index: 4, kind: input, shape index: {}]
  %s5 = inlined_call_operand.vmem [shape: f32[1,128], index: 5, kind: input, shape index: {}]
  %s6 = inlined_call_operand.hbm [shape: f32[32,32], index: 6, kind: input, shape index: {}]
  %s7 = inlined_call_operand.hbm [shape: f32[32,32], index: 7, kind: input, shape index: {}]
  %s8 = inlined_call_operand.hbm [shape: f32[32,32], index: 8, kind: input, shape index: {}]
  %s9 = inlined_call_operand.hbm [shape: f32[32,64], index: 9, kind: input, shape index: {}]
  %s10 = inlined_call_operand.vmem [shape: f32[1,64], index: 10, kind: input, shape index: {}]
  %s11 = inlined_call_operand.hbm [shape: f32[8,32], index: 11, kind: output, shape index: {0}]
  %s12 = inlined_call_operand.hbm [shape: f32[8,32], index: 12, kind: output, shape index: {1}]
  %s13 = inlined_call_operand.hbm [shape: f32[8,8], index: 13, kind: output, shape index: {2}]
  %s14 = inlined_call_operand.hbm [shape: f32[8,64], index: 14, kind: output, shape index: {3}]
  %15 = xla_tuple %s11, %s12, %s13, %s14
  %s16 = sld [smem:[#allocation0]]
  $region114: #{tpu_custom_call.1} parent=0
    _
  %s18 = ssub.s32 1, %s16
  %s19 = scalar_select 0, %s18, %s16
  $region1: #{tpu_custom_call.1} parent=0
    #allocation2 [shape = 'u8[4096]{0}', space=vmem, size = 0x1000, scoped, tag = 'input window, operand 0, single buffered']
    #allocation3 [shape = 's32[1]{0}', space=sflag, size = 0x4, scoped, tag = 'scoped memory for tpu_custom_call.1']
    #allocation4 [shape = 's32[1]{0}', space=sflag, size = 0x4, scoped, tag = 'scoped memory for tpu_custom_call.1']
    #allocation5 [shape = 'u8[4096]{0}', space=vmem, size = 0x1000, scoped, tag = 'input window, operand 1, single buffered']
    #allocation6 [shape = 's32[1]{0}', space=sflag, size = 0x4, scoped, tag = 'scoped memory for tpu_custom_call.1']
    #allocation7 [shape = 'u8[32768]{0}', space=vmem, size = 0x8000, scoped, tag = 'input window, operand 2, single buffered']
    #allocation8 [shape = 'u8[4096]{0}', space=vmem, size = 0x1000, scoped, tag = 'input window, operand 3, single buffered']
    #allocation9 [shape = 's32[1]{0}', space=sflag, size = 0x4, scoped, tag = 'scoped memory for tpu_custom_call.1']
    #allocation10 [shape = 'u8[24576]{0}', space=vmem, size = 0x6000, scoped, tag = 'input window, operand 4, single buffered']
    #allocation11 [shape = 'u8[16384]{0}', space=vmem, size = 0x4000, scoped, tag = 'input window, operand 6, single buffered']
    #allocation12 [shape = 's32[1]{0}', space=sflag, size = 0x4, scoped, tag = 'scoped memory for tpu_custom_call.1']
    #allocation13 [shape = 'u8[16384]{0}', space=vmem, size = 0x4000, scoped, tag = 'input window, operand 7, single buffered']
    #allocation14 [shape = 'u8[16384]{0}', space=vmem, size = 0x4000, scoped, tag = 'input window, operand 8, single buffered']
    #allocation15 [shape = 's32[1]{0}', space=sflag, size = 0x4, scoped, tag = 'scoped memory for tpu_custom_call.1']
    #allocation16 [shape = 'u8[16384]{0}', space=vmem, size = 0x4000, scoped, tag = 'input window, operand 9, single buffered']
    #allocation17 [shape = 'u8[4096]{0}', space=vmem, size = 0x1000, scoped, tag = 'output window, operand 0, single buffered']
    #allocation18 [shape = 'u8[4096]{0}', space=vmem, size = 0x1000, scoped, tag = 'output window, operand 1, single buffered']
    #allocation19 [shape = 's32[1]{0}', space=sflag, size = 0x4, scoped, tag = 'scoped memory for tpu_custom_call.1']
    #allocation20 [shape = 'u8[4096]{0}', space=vmem, size = 0x1000, scoped, tag = 'output window, operand 2, single buffered']
    #allocation21 [shape = 'u8[4096]{0}', space=vmem, size = 0x1000, scoped, tag = 'output window, operand 3, single buffered']
    #allocation22 [shape = 's32[1]{0}', space=sflag, size = 0x4, scoped, tag = 'scoped memory for tpu_custom_call.1']
    %20 = vsyncpa [#allocation3], 0
    %21 = vsyncpa [#allocation6], 0
    %22 = vsyncpa [#allocation9], 0
    %23 = vsyncpa [#allocation12], 0
    %24 = vsyncpa [#allocation15], 0
    %25 = vsyncpa [#allocation4], 0
    %26 = vsyncpa [#allocation19], 0
    %27 = vsyncpa [#allocation22], 0
    // Predicated region
    $region2: #{tpu_custom_call.1} parent=1 // pred_check
      _
    $region3: #{tpu_custom_call.1} parent=1 // pred_check_branch
      %29 = sbr.rel (0) target = $region5
    $region4: #{tpu_custom_call.1} parent=1 // pred_region
      %31 = vsyncadd [#allocation3], 0
      %s33 = sshll.u32 %s0, 4
      %s34 = int_to_ptr.hbm [resolvable:$true] %s33
      %s35 = sshll.u32 [#allocation2], 4
      %s36 = int_to_ptr.vmem [resolvable:$true] %s35
      %38 = dma.hbm_to_vmem [thread:$0]  %s34, 128, %s36, [#allocation3]
    $region5: #{tpu_custom_call.1} parent=1 // pred_fallthru
      _
    // Predicated region
    $region6: #{tpu_custom_call.1} parent=1 // pred_check
      _
    $region7: #{tpu_custom_call.1} parent=1 // pred_check_branch
      %40 = sbr.rel (0) target = $region9
    $region8: #{tpu_custom_call.1} parent=1 // pred_region
      %42 = vsyncadd [#allocation6], 0
      %s44 = sshll.u32 %s1, 4
      %s45 = int_to_ptr.hbm [resolvable:$true] %s44
      %s46 = sshll.u32 [#allocation5], 4
      %s47 = int_to_ptr.vmem [resolvable:$true] %s46
      %49 = dma.hbm_to_vmem [thread:$0]  %s45, 128, %s47, [#allocation6]
    $region9: #{tpu_custom_call.1} parent=1 // pred_fallthru
      _
    // Predicated region
    $region10: #{tpu_custom_call.1} parent=1 // pred_check
      _
    $region11: #{tpu_custom_call.1} parent=1 // pred_check_branch
      %51 = sbr.rel (0) target = $region13
    $region12: #{tpu_custom_call.1} parent=1 // pred_region
      %53 = vsyncadd [#allocation6], 0
      %s54 = sshll.u32 %s2, 4
      %s55 = int_to_ptr.hbm [resolvable:$true] %s54
      %s56 = sshll.u32 [#allocation7], 4
      %s57 = int_to_ptr.vmem [resolvable:$true] %s56
      %62 = dma.hbm_to_vmem [thread:$0]  %s55, 1024, %s57, [#allocation6], 128, 128, 8
    $region13: #{tpu_custom_call.1} parent=1 // pred_fallthru
      _
    // Predicated region
    $region14: #{tpu_custom_call.1} parent=1 // pred_check
      _
    $region15: #{tpu_custom_call.1} parent=1 // pred_check_branch
      %64 = sbr.rel (0) target = $region17
    $region16: #{tpu_custom_call.1} parent=1 // pred_region
      %66 = vsyncadd [#allocation9], 0
      %s68 = sshll.u32 %s3, 4
      %s69 = int_to_ptr.hbm [resolvable:$true] %s68
      %s70 = sshll.u32 [#allocation8], 4
      %s71 = int_to_ptr.vmem [resolvable:$true] %s70
      %73 = dma.hbm_to_vmem [thread:$0]  %s69, 128, %s71, [#allocation9]
    $region17: #{tpu_custom_call.1} parent=1 // pred_fallthru
      _
    // Predicated region
    $region18: #{tpu_custom_call.1} parent=1 // pred_check
      _
    $region19: #{tpu_custom_call.1} parent=1 // pred_check_branch
      %75 = sbr.rel (0) target = $region21
    $region20: #{tpu_custom_call.1} parent=1 // pred_region
      %77 = vsyncadd [#allocation9], 0
      %s78 = sshll.u32 %s4, 4
      %s79 = int_to_ptr.hbm [resolvable:$true] %s78
      %s80 = sshll.u32 [#allocation10], 4
      %s81 = int_to_ptr.vmem [resolvable:$true] %s80
      %86 = dma.hbm_to_vmem [thread:$0]  %s79, 768, %s81, [#allocation9], 128, 128, 8
    $region21: #{tpu_custom_call.1} parent=1 // pred_fallthru
      _
    // Predicated region
    $region22: #{tpu_custom_call.1} parent=1 // pred_check
      _
    $region23: #{tpu_custom_call.1} parent=1 // pred_check_branch
      %88 = sbr.rel (0) target = $region25
    $region24: #{tpu_custom_call.1} parent=1 // pred_region
      _
    $region25: #{tpu_custom_call.1} parent=1 // pred_fallthru
      _
    // Predicated region
    $region26: #{tpu_custom_call.1} parent=1 // pred_check
      _
    $region27: #{tpu_custom_call.1} parent=1 // pred_check_branch
      %90 = sbr.rel (0) target = $region29
    $region28: #{tpu_custom_call.1} parent=1 // pred_region
      %92 = vsyncadd [#allocation12], 0
      %s93 = sshll.u32 %s6, 4
      %s94 = int_to_ptr.hbm [resolvable:$true] %s93
      %s95 = sshll.u32 [#allocation11], 4
      %s96 = int_to_ptr.vmem [resolvable:$true] %s95
      %101 = dma.hbm_to_vmem [thread:$0]  %s94, 512, %s96, [#allocation12], 128, 128, 8
    $region29: #{tpu_custom_call.1} parent=1 // pred_fallthru
      _
    // Predicated region
    $region30: #{tpu_custom_call.1} parent=1 // pred_check
      _
    $region31: #{tpu_custom_call.1} parent=1 // pred_check_branch
      %103 = sbr.rel (0) target = $region33
    $region32: #{tpu_custom_call.1} parent=1 // pred_region
      %105 = vsyncadd [#allocation12], 0
      %s106 = sshll.u32 %s7, 4
      %s107 = int_to_ptr.hbm [resolvable:$true] %s106
      %s108 = sshll.u32 [#allocation13], 4
      %s109 = int_to_ptr.vmem [resolvable:$true] %s108
      %114 = dma.hbm_to_vmem [thread:$0]  %s107, 512, %s109, [#allocation12], 128, 128, 8
    $region33: #{tpu_custom_call.1} parent=1 // pred_fallthru
      _
    // Predicated region
    $region34: #{tpu_custom_call.1} parent=1 // pred_check
      _
    $region35: #{tpu_custom_call.1} parent=1 // pred_check_branch
      %116 = sbr.rel (0) target = $region37
    $region36: #{tpu_custom_call.1} parent=1 // pred_region
      %118 = vsyncadd [#allocation15], 0
      %s119 = sshll.u32 %s8, 4
      %s120 = int_to_ptr.hbm [resolvable:$true] %s119
      %s121 = sshll.u32 [#allocation14], 4
      %s122 = int_to_ptr.vmem [resolvable:$true] %s121
      %127 = dma.hbm_to_vmem [thread:$0]  %s120, 512, %s122, [#allocation15], 128, 128, 8
    $region37: #{tpu_custom_call.1} parent=1 // pred_fallthru
      _
    // Predicated region
    $region38: #{tpu_custom_call.1} parent=1 // pred_check
      _
    $region39: #{tpu_custom_call.1} parent=1 // pred_check_branch
      %129 = sbr.rel (0) target = $region41
    $region40: #{tpu_custom_call.1} parent=1 // pred_region
      %131 = vsyncadd [#allocation15], 0
      %s132 = sshll.u32 %s9, 4
      %s133 = int_to_ptr.hbm [resolvable:$true] %s132
      %s134 = sshll.u32 [#allocation16], 4
      %s135 = int_to_ptr.vmem [resolvable:$true] %s134
      %140 = dma.hbm_to_vmem [thread:$0]  %s133, 512, %s135, [#allocation15], 128, 128, 8
    $region41: #{tpu_custom_call.1} parent=1 // pred_fallthru
      _
    // Predicated region
    $region42: #{tpu_custom_call.1} parent=1 // pred_check
      _
    $region43: #{tpu_custom_call.1} parent=1 // pred_check_branch
      %142 = sbr.rel (0) target = $region45
    $region44: #{tpu_custom_call.1} parent=1 // pred_region
      _
    $region45: #{tpu_custom_call.1} parent=1 // pred_fallthru
      _
    // Predicated region
    $region46: #{tpu_custom_call.1} parent=1 // pred_check
      _
    $region47: #{tpu_custom_call.1} parent=1 // pred_check_branch
      %144 = sbr.rel (0) target = $region49
    $region48: #{tpu_custom_call.1} parent=1 // pred_region
      %146 = dma.done [#allocation3], 128
    $region49: #{tpu_custom_call.1} parent=1 // pred_fallthru
      _
    // Predicated region
    $region50: #{tpu_custom_call.1} parent=1 // pred_check
      _
    $region51: #{tpu_custom_call.1} parent=1 // pred_check_branch
      %148 = sbr.rel (0) target = $region53
    $region52: #{tpu_custom_call.1} parent=1 // pred_region
      %150 = dma.done [#allocation6], 128
    $region53: #{tpu_custom_call.1} parent=1 // pred_fallthru
      _
    // Predicated region
    $region54: #{tpu_custom_call.1} parent=1 // pred_check
      _
    $region55: #{tpu_custom_call.1} parent=1 // pred_check_branch
      %152 = sbr.rel (0) target = $region57
    $region56: #{tpu_custom_call.1} parent=1 // pred_region
      %154 = dma.done [#allocation6], 1024
    $region57: #{tpu_custom_call.1} parent=1 // pred_fallthru
      _
    // Predicated region
    $region58: #{tpu_custom_call.1} parent=1 // pred_check
      _
    $region59: #{tpu_custom_call.1} parent=1 // pred_check_branch
      %156 = sbr.rel (0) target = $region61
    $region60: #{tpu_custom_call.1} parent=1 // pred_region
      %158 = dma.done [#allocation9], 128
    $region61: #{tpu_custom_call.1} parent=1 // pred_fallthru
      _
    // Predicated region
    $region62: #{tpu_custom_call.1} parent=1 // pred_check
      _
    $region63: #{tpu_custom_call.1} parent=1 // pred_check_branch
      %160 = sbr.rel (0) target = $region65
    $region64: #{tpu_custom_call.1} parent=1 // pred_region
      %162 = dma.done [#allocation9], 768
    $region65: #{tpu_custom_call.1} parent=1 // pred_fallthru
      _
    // Predicated region
    $region66: #{tpu_custom_call.1} parent=1 // pred_check
      _
    $region67: #{tpu_custom_call.1} parent=1 // pred_check_branch
      %164 = sbr.rel (0) target = $region69
    $region68: #{tpu_custom_call.1} parent=1 // pred_region
      %166 = dma.done [#allocation12], 512
    $region69: #{tpu_custom_call.1} parent=1 // pred_fallthru
      _
    // Predicated region
    $region70: #{tpu_custom_call.1} parent=1 // pred_check
      _
    $region71: #{tpu_custom_call.1} parent=1 // pred_check_branch
      %168 = sbr.rel (0) target = $region73
    $region72: #{tpu_custom_call.1} parent=1 // pred_region
      %170 = dma.done [#allocation12], 512
    $region73: #{tpu_custom_call.1} parent=1 // pred_fallthru
      _
    // Predicated region
    $region74: #{tpu_custom_call.1} parent=1 // pred_check
      _
    $region75: #{tpu_custom_call.1} parent=1 // pred_check_branch
      %172 = sbr.rel (0) target = $region77
    $region76: #{tpu_custom_call.1} parent=1 // pred_region
      %174 = dma.done [#allocation15], 512
    $region77: #{tpu_custom_call.1} parent=1 // pred_fallthru
      _
    // Predicated region
    $region78: #{tpu_custom_call.1} parent=1 // pred_check
      _
    $region79: #{tpu_custom_call.1} parent=1 // pred_check_branch
      %176 = sbr.rel (0) target = $region81
    $region80: #{tpu_custom_call.1} parent=1 // pred_region
      %178 = dma.done [#allocation15], 512
    $region81: #{tpu_custom_call.1} parent=1 // pred_fallthru
      _
    %v179 = vld [vmem:[#allocation2] sm:$0xff]
    %v180 = vld [vmem:[#allocation5] sm:$0xff]
    %v181 = vld [vmem:[#allocation7] sm:$0xff]
    %v182 = vld [vmem:[#allocation7 + $0x8] sm:$0xff]
    %v183 = vld [vmem:[#allocation7 + $0x10] sm:$0xff]
    %v184 = vld [vmem:[#allocation7 + $0x18] sm:$0xff]
    %v185 = vld [vmem:[#allocation7 + $0x20] sm:$0xff]
    %v186 = vld [vmem:[#allocation7 + $0x28] sm:$0xff]
    %v187 = vld [vmem:[#allocation7 + $0x30] sm:$0xff]
    %v188 = vld [vmem:[#allocation7 + $0x38] sm:$0xff]
    %v189 = vld [vmem:[#allocation8] sm:$0xff]
    %v190 = vld [vmem:[#allocation10] sm:$0xff]
    %v191 = vld [vmem:[#allocation10 + $0x8] sm:$0xff]
    %v192 = vld [vmem:[#allocation10 + $0x10] sm:$0xff]
    %v193 = vld [vmem:[#allocation10 + $0x18] sm:$0xff]
    %v194 = vld [vmem:[#allocation10 + $0x20] sm:$0xff]
    %v195 = vld [vmem:[#allocation10 + $0x28] sm:$0xff]
    %v196 = vld [vmem:[%s5] sm:$0x1]
    %v198 = vperm.slane %v196, 0
    %vm200 = vcmask 392192
    %v202 = vsel %vm200, %v179, 0
    %204 = vmatpush.msra.mxu0 0.0
    %205 = vmatpush.msra.mxu0 0.0
    %206 = vmatpush.msra.mxu0 0.0
    %207 = vmatpush.msra.mxu0 0.0
    %208 = vmatpush.msra.mxu0 0.0
    %209 = vmatpush.msra.mxu0 0.0
    %210 = vmatpush.msra.mxu0 0.0
    %211 = vmatpush.msra.mxu0 0.0
    %212 = vmatpush.msra.mxu0 0.0
    %213 = vmatpush.msra.mxu0 0.0
    %214 = vmatpush.msra.mxu0 %v195
    %215 = vmatpush.msra.mxu0 %v194
    %216 = vmatpush.msra.mxu0 %v193
    %217 = vmatpush.msra.mxu0 %v192
    %218 = vmatpush.msra.mxu0 %v191
    %219 = vmatpush.msra.mxu0 %v190
    %220 = vmatmul.f32.gmra.mxu0 %v202
    %v221 = vpop.f32.mrf.mxu0
    %v222 = vadd.f32 %v198, %v221
    %223 = vdwg.mxu0
    %v224 = vxor.u32 %v222, 2147483648
    %v225 = vmul.f32 %v224, 1.442695
    %v226 = vpow.pop %v225
    %v227 = vadd.f32 %v226, 1.0
    %v228 = vrcp.pop %v227
    %v229 = vmul.f32 %v227, %v228
    %v230 = vsub.f32 1.0, %v229
    %v231 = vmul.f32 %v228, %v230
    %v232 = vadd.f32 %v228, %v231
    %vm233 = vweird.f32 %v227
    %vm234 = vweird.f32 %v228
    %vm235 = vmor %vm233, %vm234
    %v236 = vsel %vm235, %v228, %v232
    %v237 = vand.u32 2147483647, %v227
    %vm238 = vcmp.eq.f32.partialorder %v237, 8.507059e+37
    %v239 = vand.u32 %v227, 2147483648
    %v240 = vor.u32 1.1754944e-38, %v239
    %v241 = vsel %vm238, %v240, %v236
    %v242 = vmul.f32 1.0, %v241
    %v243 = vtanh.pop %v222
    %245 = vrot.lane.b32.xlu0 %v180, 32
    %v246 = vpop.permute.xlu0 %245
    %v248 = vmul.f32 %v242, %v246
    %250 = vrot.lane.b32.xlu0 %v243, 64
    %v251 = vpop.permute.xlu0 %250
    %v253 = vmul.f32 %v242, %v251
    %255 = vrot.lane.b32.xlu0 %v253, 32
    %v256 = vpop.permute.xlu0 %255
    %v258 = vadd.f32 %v248, %v256
    %v259 = vtanh.pop %v258
    %261 = vrot.lane.b32.xlu0 %v259, 64
    %v262 = vpop.permute.xlu0 %261
    %v264 = vmul.f32 %v242, %v262
    %v265 = vld [vmem:[#allocation11] sm:$0xff]
    %v266 = vld [vmem:[#allocation11 + $0x8] sm:$0xff]
    %v267 = vld [vmem:[#allocation11 + $0x10] sm:$0xff]
    %v268 = vld [vmem:[#allocation11 + $0x18] sm:$0xff]
    %270 = vrot.lane.b32.xlu0 %v264, 32
    %v271 = vpop.permute.xlu0 %270
    %vm272 = vcmask 261120
    %v273 = vsel %vm272, %v271, 0
    %275 = vmatpush.msra.mxu0 0.0
    %276 = vmatpush.msra.mxu0 0.0
    %277 = vmatpush.msra.mxu0 0.0
    %278 = vmatpush.msra.mxu0 0.0
    %279 = vmatpush.msra.mxu0 0.0
    %280 = vmatpush.msra.mxu0 0.0
    %281 = vmatpush.msra.mxu0 0.0
    %282 = vmatpush.msra.mxu0 0.0
    %283 = vmatpush.msra.mxu0 0.0
    %284 = vmatpush.msra.mxu0 0.0
    %285 = vmatpush.msra.mxu0 0.0
    %286 = vmatpush.msra.mxu0 0.0
    %287 = vmatpush.msra.mxu0 %v268
    %288 = vmatpush.msra.mxu0 %v267
    %289 = vmatpush.msra.mxu0 %v266
    %290 = vmatpush.msra.mxu0 %v265
    %291 = vmatmul.f32.gmra.mxu0 %v273
    %v292 = vpop.f32.mrf.mxu0
    %v293 = vadd.f32 0.0, %v292
    %294 = vdwg.mxu0
    %v296 = vrot.slane %v293, 1
    %v297 = vrot.slane %v293, 2
    %v298 = vrot.slane %v293, 3
    %v299 = vrot.slane %v293, 4
    %v300 = vrot.slane %v293, 5
    %v301 = vrot.slane %v293, 6
    %v302 = vrot.slane %v293, 7
    %v303 = vperm.slane %v293, 0
    %v304 = vperm.slane %v296, 0
    %v305 = vperm.slane %v297, 0
    %v306 = vperm.slane %v298, 0
    %v307 = vperm.slane %v299, 0
    %v308 = vperm.slane %v300, 0
    %v309 = vperm.slane %v301, 0
    %v310 = vperm.slane %v302, 0
    %v319 = vmul.f32 %v181, %v303
    %v320 = vmul.f32 %v182, %v304
    %v321 = vmul.f32 %v183, %v305
    %v322 = vmul.f32 %v184, %v306
    %v323 = vmul.f32 %v185, %v307
    %v324 = vmul.f32 %v186, %v308
    %v325 = vmul.f32 %v187, %v309
    %v326 = vmul.f32 %v188, %v310
    %v327 = vsel %vm272, %v319, 0.0
    %328 = vadd.xlane.f32.xlu0 %v327
    %v329 = vpop.xlane.xlu0 %328
    %v330 = vsel %vm272, %v320, 0.0
    %331 = vadd.xlane.f32.xlu0 %v330
    %v332 = vpop.xlane.xlu0 %331
    %v333 = vsel %vm272, %v321, 0.0
    %334 = vadd.xlane.f32.xlu0 %v333
    %v335 = vpop.xlane.xlu0 %334
    %v336 = vsel %vm272, %v322, 0.0
    %337 = vadd.xlane.f32.xlu0 %v336
    %v338 = vpop.xlane.xlu0 %337
    %v339 = vsel %vm272, %v323, 0.0
    %340 = vadd.xlane.f32.xlu0 %v339
    %v341 = vpop.xlane.xlu0 %340
    %v342 = vsel %vm272, %v324, 0.0
    %343 = vadd.xlane.f32.xlu0 %v342
    %v344 = vpop.xlane.xlu0 %343
    %v345 = vsel %vm272, %v325, 0.0
    %346 = vadd.xlane.f32.xlu0 %v345
    %v347 = vpop.xlane.xlu0 %346
    %v348 = vsel %vm272, %v326, 0.0
    %349 = vadd.xlane.f32.xlu0 %v348
    %v350 = vpop.xlane.xlu0 %349
    %vm351 = vcmp.gt.f32.partialorder %v189, 0.5
    %v360 = vlaneseq
    %v361 = vand.u32 %v360, 127
    %v362 = vperm.slane %v329, %v361
    %v363 = vperm.slane %v332, %v361
    %v364 = vperm.slane %v335, %v361
    %v365 = vperm.slane %v338, %v361
    %v366 = vperm.slane %v341, %v361
    %v367 = vperm.slane %v344, %v361
    %v368 = vperm.slane %v347, %v361
    %v369 = vperm.slane %v350, %v361
    %vm370 = vcmask 1041409
    %v371 = vsel %vm370, %v363, %v362
    %vm372 = vcmask 1042434
    %v373 = vsel %vm372, %v364, %v371
    %vm374 = vcmask 1043459
    %v375 = vsel %vm374, %v365, %v373
    %vm376 = vcmask 1044484
    %v377 = vsel %vm376, %v366, %v375
    %vm378 = vcmask 1045509
    %v379 = vsel %vm378, %v367, %v377
    %vm380 = vcmask 1046534
    %v381 = vsel %vm380, %v368, %v379
    %vm382 = vcmask 1047559
    %v383 = vsel %vm382, %v369, %v381
    %v385 = vsel %vm351, -inf, %v383
    %vm386 = vcmask 64512
    %v387 = vsel %vm386, %v385, -inf
    %388 = vmax.xlane.f32.xlu0 %v387
    %v389 = vpop.xlane.xlu0 %388
    %v390 = vsub.f32 %v385, %v389
    %v391 = vmul.f32 %v390, 1.442695
    %v392 = vpow.pop %v391
    %v393 = vsel %vm386, %v392, 0.0
    %394 = vadd.xlane.f32.xlu0 %v393
    %v395 = vpop.xlane.xlu0 %394
    %v396 = vrcp.pop %v395
    %v397 = vmul.f32 %v395, %v396
    %v398 = vsub.f32 1.0, %v397
    %v399 = vmul.f32 %v396, %v398
    %v400 = vadd.f32 %v396, %v399
    %vm401 = vweird.f32 %v395
    %vm402 = vweird.f32 %v396
    %vm403 = vmor %vm401, %vm402
    %v404 = vsel %vm403, %v396, %v400
    %v405 = vand.u32 2147483647, %v395
    %vm406 = vcmp.eq.f32.partialorder %v405, 8.507059e+37
    %v407 = vand.u32 %v395, 2147483648
    %v408 = vor.u32 1.1754944e-38, %v407
    %v409 = vsel %vm406, %v408, %v404
    %v410 = vmul.f32 %v392, %v409
    %v411 = vperm.slane %v410, 0
    %v412 = vlaneseq
    %v413 = vshrl.u32 %v412, 7
    %415 = vset.pattern.permute.xlu0 %v413
    %416 = vperm.xlu0 %415, %v411
    %v417 = vpop.permute.xlu0 %416
    %v418 = vperm.slane %v410, 1
    %v419 = vlaneseq
    %v420 = vshrl.u32 %v419, 7
    %422 = vset.pattern.permute.xlu0 %v420
    %423 = vperm.xlu0 %422, %v418
    %v424 = vpop.permute.xlu0 %423
    %v425 = vperm.slane %v410, 2
    %v426 = vlaneseq
    %v427 = vshrl.u32 %v426, 7
    %429 = vset.pattern.permute.xlu0 %v427
    %430 = vperm.xlu0 %429, %v425
    %v431 = vpop.permute.xlu0 %430
    %v432 = vperm.slane %v410, 3
    %v433 = vlaneseq
    %v434 = vshrl.u32 %v433, 7
    %436 = vset.pattern.permute.xlu0 %v434
    %437 = vperm.xlu0 %436, %v432
    %v438 = vpop.permute.xlu0 %437
    %v439 = vperm.slane %v410, 4
    %v440 = vlaneseq
    %v441 = vshrl.u32 %v440, 7
    %443 = vset.pattern.permute.xlu0 %v441
    %444 = vperm.xlu0 %443, %v439
    %v445 = vpop.permute.xlu0 %444
    %v446 = vperm.slane %v410, 5
    %v447 = vlaneseq
    %v448 = vshrl.u32 %v447, 7
    %450 = vset.pattern.permute.xlu0 %v448
    %451 = vperm.xlu0 %450, %v446
    %v452 = vpop.permute.xlu0 %451
    %v453 = vperm.slane %v410, 6
    %v454 = vlaneseq
    %v455 = vshrl.u32 %v454, 7
    %457 = vset.pattern.permute.xlu0 %v455
    %458 = vperm.xlu0 %457, %v453
    %v459 = vpop.permute.xlu0 %458
    %v460 = vperm.slane %v410, 7
    %v461 = vlaneseq
    %v462 = vshrl.u32 %v461, 7
    %464 = vset.pattern.permute.xlu0 %v462
    %465 = vperm.xlu0 %464, %v460
    %v466 = vpop.permute.xlu0 %465
    %v467 = vmul.f32 %v417, %v181
    %v468 = vmul.f32 %v424, %v182
    %v469 = vmul.f32 %v431, %v183
    %v470 = vmul.f32 %v438, %v184
    %v471 = vmul.f32 %v445, %v185
    %v472 = vmul.f32 %v452, %v186
    %v473 = vmul.f32 %v459, %v187
    %v474 = vmul.f32 %v466, %v188
    %v475 = vsel %vm272, %v467, 0.0
    %v476 = vrot.slane %v475, 4
    %v477 = vadd.f32 %v475, %v476
    %v478 = vrot.slane %v477, 2
    %v479 = vadd.f32 %v477, %v478
    %v480 = vrot.slane %v479, 1
    %v481 = vadd.f32 %v479, %v480
    %v482 = vsel %vm272, %v468, 0.0
    %v483 = vrot.slane %v482, 4
    %v484 = vadd.f32 %v482, %v483
    %v485 = vrot.slane %v484, 2
    %v486 = vadd.f32 %v484, %v485
    %v487 = vrot.slane %v486, 1
    %v488 = vadd.f32 %v486, %v487
    %v489 = vsel %vm272, %v469, 0.0
    %v490 = vrot.slane %v489, 4
    %v491 = vadd.f32 %v489, %v490
    %v492 = vrot.slane %v491, 2
    %v493 = vadd.f32 %v491, %v492
    %v494 = vrot.slane %v493, 1
    %v495 = vadd.f32 %v493, %v494
    %v496 = vsel %vm272, %v470, 0.0
    %v497 = vrot.slane %v496, 4
    %v498 = vadd.f32 %v496, %v497
    %v499 = vrot.slane %v498, 2
    %v500 = vadd.f32 %v498, %v499
    %v501 = vrot.slane %v500, 1
    %v502 = vadd.f32 %v500, %v501
    %v503 = vsel %vm272, %v471, 0.0
    %v504 = vrot.slane %v503, 4
    %v505 = vadd.f32 %v503, %v504
    %v506 = vrot.slane %v505, 2
    %v507 = vadd.f32 %v505, %v506
    %v508 = vrot.slane %v507, 1
    %v509 = vadd.f32 %v507, %v508
    %v510 = vsel %vm272, %v472, 0.0
    %v511 = vrot.slane %v510, 4
    %v512 = vadd.f32 %v510, %v511
    %v513 = vrot.slane %v512, 2
    %v514 = vadd.f32 %v512, %v513
    %v515 = vrot.slane %v514, 1
    %v516 = vadd.f32 %v514, %v515
    %v517 = vsel %vm272, %v473, 0.0
    %v518 = vrot.slane %v517, 4
    %v519 = vadd.f32 %v517, %v518
    %v520 = vrot.slane %v519, 2
    %v521 = vadd.f32 %v519, %v520
    %v522 = vrot.slane %v521, 1
    %v523 = vadd.f32 %v521, %v522
    %v524 = vsel %vm272, %v474, 0.0
    %v525 = vrot.slane %v524, 4
    %v526 = vadd.f32 %v524, %v525
    %v527 = vrot.slane %v526, 2
    %v528 = vadd.f32 %v526, %v527
    %v529 = vrot.slane %v528, 1
    %v530 = vadd.f32 %v528, %v529
    %v531 = vld [vmem:[#allocation13] sm:$0xff]
    %v532 = vld [vmem:[#allocation13 + $0x8] sm:$0xff]
    %v533 = vld [vmem:[#allocation13 + $0x10] sm:$0xff]
    %v534 = vld [vmem:[#allocation13 + $0x18] sm:$0xff]
    %v535 = vld [vmem:[#allocation14] sm:$0xff]
    %v536 = vld [vmem:[#allocation14 + $0x8] sm:$0xff]
    %v537 = vld [vmem:[#allocation14 + $0x10] sm:$0xff]
    %v538 = vld [vmem:[#allocation14 + $0x18] sm:$0xff]
    %539 = vmatpush.msra.mxu0 0.0
    %540 = vmatpush.msra.mxu0 0.0
    %541 = vmatpush.msra.mxu0 0.0
    %542 = vmatpush.msra.mxu0 0.0
    %543 = vmatpush.msra.mxu0 0.0
    %544 = vmatpush.msra.mxu0 0.0
    %545 = vmatpush.msra.mxu0 0.0
    %546 = vmatpush.msra.mxu0 0.0
    %547 = vmatpush.msra.mxu0 0.0
    %548 = vmatpush.msra.mxu0 0.0
    %549 = vmatpush.msra.mxu0 0.0
    %550 = vmatpush.msra.mxu0 0.0
    %551 = vmatpush.msra.mxu0 %v538
    %552 = vmatpush.msra.mxu0 %v537
    %553 = vmatpush.msra.mxu0 %v536
    %554 = vmatpush.msra.mxu0 %v535
    %555 = vmatmul.f32.gmra.mxu0 %v273
    %v556 = vpop.f32.mrf.mxu0
    %v557 = vadd.f32 0.0, %v556
    %558 = vdwg.mxu0
    %v567 = vsel %vm370, %v488, %v481
    %v568 = vsel %vm372, %v495, %v567
    %v569 = vsel %vm374, %v502, %v568
    %v570 = vsel %vm376, %v509, %v569
    %v571 = vsel %vm378, %v516, %v570
    %v572 = vsel %vm380, %v523, %v571
    %v573 = vsel %vm382, %v530, %v572
    %v574 = vsel %vm272, %v573, 0
    %576 = vmatpush.msra.mxu0 0.0
    %577 = vmatpush.msra.mxu0 0.0
    %578 = vmatpush.msra.mxu0 0.0
    %579 = vmatpush.msra.mxu0 0.0
    %580 = vmatpush.msra.mxu0 0.0
    %581 = vmatpush.msra.mxu0 0.0
    %582 = vmatpush.msra.mxu0 0.0
    %583 = vmatpush.msra.mxu0 0.0
    %584 = vmatpush.msra.mxu0 0.0
    %585 = vmatpush.msra.mxu0 0.0
    %586 = vmatpush.msra.mxu0 0.0
    %587 = vmatpush.msra.mxu0 0.0
    %588 = vmatpush.msra.mxu0 %v534
    %589 = vmatpush.msra.mxu0 %v533
    %590 = vmatpush.msra.mxu0 %v532
    %591 = vmatpush.msra.mxu0 %v531
    %592 = vmatmul.f32.gmra.mxu0 %v574
    %v593 = vpop.f32.mrf.mxu0
    %v594 = vadd.f32 %v557, %v593
    %595 = vdwg.mxu0
    %v596 = vtanh.pop %v594
    %v597 = vld [vmem:[#allocation16] sm:$0xff]
    %v598 = vld [vmem:[#allocation16 + $0x8] sm:$0xff]
    %v599 = vld [vmem:[#allocation16 + $0x10] sm:$0xff]
    %v600 = vld [vmem:[#allocation16 + $0x18] sm:$0xff]
    %v601 = vld [vmem:[%s10] sm:$0x1]
    %v603 = vperm.slane %v601, 0
    %v606 = vsel %vm272, %v596, 0
    %608 = vmatpush.msra.mxu0 0.0
    %609 = vmatpush.msra.mxu0 0.0
    %610 = vmatpush.msra.mxu0 0.0
    %611 = vmatpush.msra.mxu0 0.0
    %612 = vmatpush.msra.mxu0 0.0
    %613 = vmatpush.msra.mxu0 0.0
    %614 = vmatpush.msra.mxu0 0.0
    %615 = vmatpush.msra.mxu0 0.0
    %616 = vmatpush.msra.mxu0 0.0
    %617 = vmatpush.msra.mxu0 0.0
    %618 = vmatpush.msra.mxu0 0.0
    %619 = vmatpush.msra.mxu0 0.0
    %620 = vmatpush.msra.mxu0 %v600
    %621 = vmatpush.msra.mxu0 %v599
    %622 = vmatpush.msra.mxu0 %v598
    %623 = vmatpush.msra.mxu0 %v597
    %624 = vmatmul.f32.gmra.mxu0 %v606
    %v625 = vpop.f32.mrf.mxu0
    %v626 = vadd.f32 %v603, %v625
    %627 = vdwg.mxu0
    %629 = vst.msk [vmem:[#allocation17] sm:$0xff] %vm272, %v271
    %631 = vrot.lane.b32.xlu0 %v258, 96
    %v632 = vpop.permute.xlu0 %631
    %634 = vst.msk [vmem:[#allocation18] sm:$0xff] %vm272, %v632
    %635 = vst.msk [vmem:[#allocation20] sm:$0xff] %vm386, %v410
    %vm636 = vcmask 523264
    %637 = vst.msk [vmem:[#allocation21] sm:$0xff] %vm636, %v626
    // Predicated region
    $region82: #{tpu_custom_call.1} parent=1 // pred_check
      _
    $region83: #{tpu_custom_call.1} parent=1 // pred_check_branch
      %639 = sbr.rel (0) target = $region85
    $region84: #{tpu_custom_call.1} parent=1 // pred_region
      %641 = vsyncadd [#allocation4], 0
      %s643 = sshll.u32 [#allocation17], 4
      %s644 = int_to_ptr.vmem [resolvable:$true] %s643
      %s645 = sshll.u32 %s11, 4
      %s646 = int_to_ptr.hbm [resolvable:$true] %s645
      %648 = dma.vmem_to_hbm [thread:$0]  %s644, 128, %s646, [#allocation4]
    $region85: #{tpu_custom_call.1} parent=1 // pred_fallthru
      _
    // Predicated region
    $region86: #{tpu_custom_call.1} parent=1 // pred_check
      _
    $region87: #{tpu_custom_call.1} parent=1 // pred_check_branch
      %650 = sbr.rel (0) target = $region89
    $region88: #{tpu_custom_call.1} parent=1 // pred_region
      %652 = vsyncadd [#allocation19], 0
      %s654 = sshll.u32 [#allocation18], 4
      %s655 = int_to_ptr.vmem [resolvable:$true] %s654
      %s656 = sshll.u32 %s12, 4
      %s657 = int_to_ptr.hbm [resolvable:$true] %s656
      %659 = dma.vmem_to_hbm [thread:$0]  %s655, 128, %s657, [#allocation19]
    $region89: #{tpu_custom_call.1} parent=1 // pred_fallthru
      _
    // Predicated region
    $region90: #{tpu_custom_call.1} parent=1 // pred_check
      _
    $region91: #{tpu_custom_call.1} parent=1 // pred_check_branch
      %661 = sbr.rel (0) target = $region93
    $region92: #{tpu_custom_call.1} parent=1 // pred_region
      %663 = vsyncadd [#allocation19], 0
      %s665 = sshll.u32 [#allocation20], 4
      %s666 = int_to_ptr.vmem [resolvable:$true] %s665
      %s667 = sshll.u32 %s13, 4
      %s668 = int_to_ptr.hbm [resolvable:$true] %s667
      %670 = dma.vmem_to_hbm [thread:$0]  %s666, 128, %s668, [#allocation19]
    $region93: #{tpu_custom_call.1} parent=1 // pred_fallthru
      _
    // Predicated region
    $region94: #{tpu_custom_call.1} parent=1 // pred_check
      _
    $region95: #{tpu_custom_call.1} parent=1 // pred_check_branch
      %672 = sbr.rel (0) target = $region97
    $region96: #{tpu_custom_call.1} parent=1 // pred_region
      %674 = vsyncadd [#allocation22], 0
      %s676 = sshll.u32 [#allocation21], 4
      %s677 = int_to_ptr.vmem [resolvable:$true] %s676
      %s678 = sshll.u32 %s14, 4
      %s679 = int_to_ptr.hbm [resolvable:$true] %s678
      %681 = dma.vmem_to_hbm [thread:$0]  %s677, 128, %s679, [#allocation22]
    $region97: #{tpu_custom_call.1} parent=1 // pred_fallthru
      _
    // Predicated region
    $region98: #{tpu_custom_call.1} parent=1 // pred_check
      _
    $region99: #{tpu_custom_call.1} parent=1 // pred_check_branch
      %683 = sbr.rel (0) target = $region101
    $region100: #{tpu_custom_call.1} parent=1 // pred_region
      %685 = dma.done [#allocation4], 128
    $region101: #{tpu_custom_call.1} parent=1 // pred_fallthru
      _
    // Predicated region
    $region102: #{tpu_custom_call.1} parent=1 // pred_check
      _
    $region103: #{tpu_custom_call.1} parent=1 // pred_check_branch
      %687 = sbr.rel (0) target = $region105
    $region104: #{tpu_custom_call.1} parent=1 // pred_region
      %689 = dma.done [#allocation19], 128
    $region105: #{tpu_custom_call.1} parent=1 // pred_fallthru
      _
    // Predicated region
    $region106: #{tpu_custom_call.1} parent=1 // pred_check
      _
    $region107: #{tpu_custom_call.1} parent=1 // pred_check_branch
      %691 = sbr.rel (0) target = $region109
    $region108: #{tpu_custom_call.1} parent=1 // pred_region
      %693 = dma.done [#allocation19], 128
    $region109: #{tpu_custom_call.1} parent=1 // pred_fallthru
      _
    // Predicated region
    $region110: #{tpu_custom_call.1} parent=1 // pred_check
      _
    $region111: #{tpu_custom_call.1} parent=1 // pred_check_branch
      %695 = sbr.rel (0) target = $region113
    $region112: #{tpu_custom_call.1} parent=1 // pred_region
      %697 = dma.done [#allocation22], 128
    $region113: #{tpu_custom_call.1} parent=1 // pred_fallthru
      _
    %698 = vsyncpa [#allocation3], 1
    %699 = vsyncpa [#allocation6], 1
    %700 = vsyncpa [#allocation9], 1
    %701 = vsyncpa [#allocation12], 1
    %702 = vsyncpa [#allocation15], 1
    %703 = vsyncpa [#allocation4], 1
    %704 = vsyncpa [#allocation19], 1
    %705 = vsyncpa [#allocation22], 1

</llo_original>
